<compile_context>
chip_gen: v6e
topology: v6e:2x2x1
jax: 0.10.0
libtpu: 0.0.40
codegen_flags: <defaults>
</compile_context>

<pallas_src>
import math

import jax
import jax.numpy as jnp
from jax.experimental import pallas as pl
from jax.experimental.pallas import tpu as pltpu

# Small shapes consistent with the module (torch used B=1, H=41, S=525, D=179).
B = 1
H = 8
S = 128
D = 128
G = 4                       # heads processed per grid step
DROP_P = 0.8                # torch.dropout(attn_weight, 0.8, True)
# keep iff bits >= threshold  ->  P(keep) = 1 - DROP_P
_DROP_THRESHOLD = int(DROP_P * (1 << 32))


def _attn_kernel(q_ref, k_ref, v_ref, mask_ref, bits_ref, o_ref):
    # q_ref/k_ref/v_ref: (G, S, D); mask_ref: (S, S); bits_ref: (G, S, S) uint32
    d_model = q_ref.shape[-1]
    scale = 1.0 / math.sqrt(d_model)

    # Scale q in f32, then cast matmul operands to bf16 (f32 accumulation on MXU).
    q = (q_ref[...] * scale).astype(jnp.bfloat16)
    k = k_ref[...].astype(jnp.bfloat16)

    # qk = q @ k^T / sqrt(d): contract the last dims directly (no explicit .T).
    s = jnp.einsum("gqd,gkd->gqk", q, k, preferred_element_type=jnp.float32)

    # + attn_mask (broadcast over the head dim)
    s = s + mask_ref[...]

    # softmax over the last axis (f32)
    m = jnp.max(s, axis=-1, keepdims=True)
    p = jnp.exp(s - m)
    denom = jnp.sum(p, axis=-1, keepdims=True)

    # EUP approximate reciprocal, with the dropout rescale 1/(1-p) folded in.
    inv = pl.reciprocal(denom, approx=True) * (1.0 / (1.0 - DROP_P))

    # dropout(p=0.8, train=True): keep with prob 0.2; compare raw uint32 bits.
    keep = bits_ref[...] >= jnp.uint32(_DROP_THRESHOLD)
    w = jnp.where(keep, p * inv, 0.0)

    # output = attn_weight @ value  (bf16 operands, f32 accumulate/output)
    o_ref[...] = jnp.einsum(
        "gqk,gkd->gqd",
        w.astype(jnp.bfloat16),
        v_ref[...].astype(jnp.bfloat16),
        preferred_element_type=jnp.float32,
    )


def attention(query, key, value, attn_mask, dropout_key, *, heads_per_block=G):
    """query/key/value: [B, H, S, D] float32; attn_mask: [1, 1, S, S] float32."""
    b, h, s, d = query.shape
    bh = b * h
    g = min(heads_per_block, bh)
    assert bh % g == 0, "B*H must be divisible by the head-batch size"

    q = query.reshape(bh, s, d)
    k = key.reshape(bh, s, d)
    v = value.reshape(bh, s, d)
    mask2d = attn_mask.reshape(s, s)

    # TODO(synk): torch's stateful global dropout RNG has no in-kernel equivalent;
    # the mask bits are drawn from an explicit JAX PRNG key in the wrapper instead.
    bits = jax.random.bits(dropout_key, (bh, s, s), dtype=jnp.uint32)

    out = pl.pallas_call(
        _attn_kernel,
        out_shape=jax.ShapeDtypeStruct((bh, s, d), jnp.float32),
        grid_spec=pltpu.PrefetchScalarGridSpec(
            num_scalar_prefetch=0,
            grid=(bh // g,),
            in_specs=[
                pl.BlockSpec((g, s, d), lambda i: (i, 0, 0)),  # q
                pl.BlockSpec((g, s, d), lambda i: (i, 0, 0)),  # k
                pl.BlockSpec((g, s, d), lambda i: (i, 0, 0)),  # v
                pl.BlockSpec((s, s), lambda i: (0, 0)),        # mask (shared)
                pl.BlockSpec((g, s, s), lambda i: (i, 0, 0)),  # dropout bits
            ],
            out_specs=pl.BlockSpec((g, s, d), lambda i: (i, 0, 0)),
        ),
        compiler_params=pltpu.CompilerParams(
            dimension_semantics=("parallel",),  # heads are independent -> megacore
        ),
    )(q, k, v, mask2d, bits)

    return out.reshape(b, h, s, d)


if __name__ == "__main__":
    root = jax.random.PRNGKey(0)
    kq, kk, kv, km, kd = jax.random.split(root, 5)

    query = jax.random.normal(kq, (B, H, S, D), dtype=jnp.float32)
    key = jax.random.normal(kk, (B, H, S, D), dtype=jnp.float32)
    value = jax.random.normal(kv, (B, H, S, D), dtype=jnp.float32)
    attn_mask = jax.random.normal(km, (1, 1, S, S), dtype=jnp.float32)

    out = attention(query, key, value, attn_mask, kd)
    out = jax.block_until_ready(out)

    assert out.shape == (B, H, S, D)
    assert bool(jnp.all(jnp.isfinite(out)))
    print("KERNEL_OK")
</pallas_src>

<mosaic_0001>
module attributes {stable_mosaic.version = 11 : i64} {
  func.func @_attn_kernel(%arg0: i32, %arg1: memref<4x128x128xf32, #tpu.memory_space<vmem>>, %arg2: memref<4x128x128xf32, #tpu.memory_space<vmem>>, %arg3: memref<4x128x128xf32, #tpu.memory_space<vmem>>, %arg4: memref<128x128xf32, #tpu.memory_space<vmem>>, %arg5: memref<4x128x128xi32, #tpu.memory_space<vmem>>, %arg6: memref<4x128x128xf32, #tpu.memory_space<vmem>>) attributes {dimension_semantics = [#tpu.dimension_semantics<parallel>], iteration_bounds = array<i64: 2>, scalar_prefetch = 0 : i64, scratch_operands = 0 : i64, tpu.core_type = #tpu.core_type<tc>, window_params = [{transform_indices = @transform_0, window_bounds = array<i64: 4, 128, 128>}, {transform_indices = @transform_1, window_bounds = array<i64: 4, 128, 128>}, {transform_indices = @transform_2, window_bounds = array<i64: 4, 128, 128>}, {pipeline_mode = #tpu.pipeline_mode<synchronous>, transform_indices = @transform_3, window_bounds = array<i64: 128, 128>}, {transform_indices = @transform_4, window_bounds = array<i64: 4, 128, 128>}, {transform_indices = @transform_5, window_bounds = array<i64: 4, 128, 128>}]} {
    %c0 = arith.constant 0 : index
    %c0_0 = arith.constant 0 : index
    %c0_1 = arith.constant 0 : index
    %0 = vector.load %arg1[%c0, %c0_0, %c0_1] : memref<4x128x128xf32, #tpu.memory_space<vmem>>, vector<4x128x128xf32>
    %cst = arith.constant 0.0883883461 : f32
    %1 = vector.broadcast %cst : f32 to vector<4x128x128xf32>
    %2 = arith.mulf %0, %1 : vector<4x128x128xf32>
    %3 = arith.truncf %2 : vector<4x128x128xf32> to vector<4x128x128xbf16>
    %c0_2 = arith.constant 0 : index
    %c0_3 = arith.constant 0 : index
    %c0_4 = arith.constant 0 : index
    %4 = vector.load %arg2[%c0_2, %c0_3, %c0_4] : memref<4x128x128xf32, #tpu.memory_space<vmem>>, vector<4x128x128xf32>
    %5 = arith.truncf %4 : vector<4x128x128xf32> to vector<4x128x128xbf16>
    "tpu.trace_start"() <{level = 10 : i32, message = "gqd,gkd->gqk"}> : () -> ()
    %cst_5 = arith.constant dense<0.000000e+00> : vector<4x128x128xf32>
    %6 = tpu.matmul %3, %5, %cst_5 {dimension_numbers = #tpu.dot_dimension_numbers<[2], [2], [1], [1], [0, 0, 0, 1, 1, 1], [0], [0]>} : vector<4x128x128xbf16>, vector<4x128x128xbf16>, vector<4x128x128xf32> -> vector<4x128x128xf32>
    "tpu.trace_stop"() : () -> ()
    %c0_6 = arith.constant 0 : index
    %c0_7 = arith.constant 0 : index
    %7 = vector.load %arg4[%c0_6, %c0_7] : memref<128x128xf32, #tpu.memory_space<vmem>>, vector<128x128xf32>
    %8 = vector.shape_cast %7 : vector<128x128xf32> to vector<1x128x128xf32>
    %9 = vector.broadcast %8 : vector<1x128x128xf32> to vector<4x128x128xf32>
    %10 = arith.addf %6, %9 : vector<4x128x128xf32>
    %cst_8 = arith.constant dense<0xFF800000> : vector<4x128xf32>
    %11 = vector.multi_reduction <maximumf>, %10, %cst_8 [2] : vector<4x128x128xf32> to vector<4x128xf32>
    %12 = vector.shape_cast %11 : vector<4x128xf32> to vector<4x128x1xf32>
    %13 = vector.broadcast %12 : vector<4x128x1xf32> to vector<4x128x128xf32>
    %14 = arith.subf %10, %13 : vector<4x128x128xf32>
    %15 = math.exp %14 : vector<4x128x128xf32>
    %cst_9 = arith.constant dense<0.000000e+00> : vector<4x128xf32>
    %16 = vector.multi_reduction <add>, %15, %cst_9 [2] : vector<4x128x128xf32> to vector<4x128xf32>
    %17 = vector.shape_cast %16 : vector<4x128xf32> to vector<4x128x1xf32>
    %18 = tpu.reciprocal %17 {approx = true} : vector<4x128x1xf32> -> vector<4x128x1xf32>
    %cst_10 = arith.constant 5.000000e+00 : f32
    %19 = vector.broadcast %cst_10 : f32 to vector<4x128x1xf32>
    %20 = arith.mulf %18, %19 : vector<4x128x1xf32>
    %c0_11 = arith.constant 0 : index
    %c0_12 = arith.constant 0 : index
    %c0_13 = arith.constant 0 : index
    %21 = vector.load %arg5[%c0_11, %c0_12, %c0_13] : memref<4x128x128xi32, #tpu.memory_space<vmem>>, vector<4x128x128xi32>
    %c-858993460_i32 = arith.constant -858993460 : i32
    %22 = vector.broadcast %c-858993460_i32 : i32 to vector<4x128x128xi32>
    %23 = arith.cmpi uge, %21, %22 : vector<4x128x128xi32>
    %24 = vector.broadcast %20 : vector<4x128x1xf32> to vector<4x128x128xf32>
    %25 = arith.mulf %15, %24 : vector<4x128x128xf32>
    %cst_14 = arith.constant 0.000000e+00 : f32
    %26 = vector.broadcast %cst_14 : f32 to vector<4x128x128xf32>
    %27 = arith.select %23, %25, %26 : vector<4x128x128xi1>, vector<4x128x128xf32>
    %28 = arith.truncf %27 : vector<4x128x128xf32> to vector<4x128x128xbf16>
    %c0_15 = arith.constant 0 : index
    %c0_16 = arith.constant 0 : index
    %c0_17 = arith.constant 0 : index
    %29 = vector.load %arg3[%c0_15, %c0_16, %c0_17] : memref<4x128x128xf32, #tpu.memory_space<vmem>>, vector<4x128x128xf32>
    %30 = arith.truncf %29 : vector<4x128x128xf32> to vector<4x128x128xbf16>
    "tpu.trace_start"() <{level = 10 : i32, message = "gqk,gkd->gqd"}> : () -> ()
    %cst_18 = arith.constant dense<0.000000e+00> : vector<4x128x128xf32>
    %31 = tpu.matmul %28, %30, %cst_18 {dimension_numbers = #tpu.dot_dimension_numbers<[2], [1], [1], [2], [0, 0, 0, 1, 1, 2], [0], [0]>} : vector<4x128x128xbf16>, vector<4x128x128xbf16>, vector<4x128x128xf32> -> vector<4x128x128xf32>
    "tpu.trace_stop"() : () -> ()
    %c0_19 = arith.constant 0 : index
    %c0_20 = arith.constant 0 : index
    %c0_21 = arith.constant 0 : index
    %32 = vector.load %arg6[%c0_19, %c0_20, %c0_21] : memref<4x128x128xf32, #tpu.memory_space<vmem>>, vector<4x128x128xf32>
    tpu.vector_store %arg6[%c0_19, %c0_20, %c0_21], %31 {strides = array<i32>} : memref<4x128x128xf32, #tpu.memory_space<vmem>>, vector<4x128x128xf32>,
    return
  }
  func.func @transform_0(%arg0: i32) -> (i32, i32, i32) {
    %c0_i32 = arith.constant 0 : i32
    %c0_i32_0 = arith.constant 0 : i32
    %c0_i32_1 = arith.constant 0 : i32
    return %arg0, %c0_i32, %c0_i32_0 : i32, i32, i32
  }
  func.func @transform_1(%arg0: i32) -> (i32, i32, i32) {
    %c0_i32 = arith.constant 0 : i32
    %c0_i32_0 = arith.constant 0 : i32
    %c0_i32_1 = arith.constant 0 : i32
    return %arg0, %c0_i32, %c0_i32_0 : i32, i32, i32
  }
  func.func @transform_2(%arg0: i32) -> (i32, i32, i32) {
    %c0_i32 = arith.constant 0 : i32
    %c0_i32_0 = arith.constant 0 : i32
    %c0_i32_1 = arith.constant 0 : i32
    return %arg0, %c0_i32, %c0_i32_0 : i32, i32, i32
  }
  func.func @transform_3(%arg0: i32) -> (i32, i32) {
    %c0_i32 = arith.constant 0 : i32
    %c0_i32_0 = arith.constant 0 : i32
    %c0_i32_1 = arith.constant 0 : i32
    return %c0_i32, %c0_i32_0 : i32, i32
  }
  func.func @transform_4(%arg0: i32) -> (i32, i32, i32) {
    %c0_i32 = arith.constant 0 : i32
    %c0_i32_0 = arith.constant 0 : i32
    %c0_i32_1 = arith.constant 0 : i32
    return %arg0, %c0_i32, %c0_i32_0 : i32, i32, i32
  }
  func.func @transform_5(%arg0: i32) -> (i32, i32, i32) {
    %c0_i32 = arith.constant 0 : i32
    %c0_i32_0 = arith.constant 0 : i32
    %c0_i32_1 = arith.constant 0 : i32
    return %arg0, %c0_i32, %c0_i32_0 : i32, i32, i32
  }
}

</mosaic_0001>

<llo_original>
// kernel: tpu_custom_call.1
$region0: #{tpu_custom_call.1}
  #allocation0 [shape = 'u32[]', space=smem, size = 0x4, offset = 0x4, fixed_abs, tag = 'smem constant byte address 0x4 - core index']
  #allocation1 [shape = 'u32[144,128]{1,0:T(1,128)}', space=vmem, size = 0x12000, scoped, tag = 'internal scratch']
  %s0 = inlined_call_operand.hbm [shape: f32[8,128,128], index: 0, kind: input, shape index: {}]
  %s1 = inlined_call_operand.hbm [shape: f32[8,128,128], index: 1, kind: input, shape index: {}]
  %s2 = inlined_call_operand.hbm [shape: f32[8,128,128], index: 2, kind: input, shape index: {}]
  %s3 = inlined_call_operand.hbm [shape: f32[128,128], index: 3, kind: input, shape index: {}]
  %s4 = inlined_call_operand.hbm [shape: u32[8,128,128], index: 4, kind: input, shape index: {}]
  %s5 = inlined_call_operand.hbm [shape: f32[8,128,128], index: 5, kind: output, shape index: {}]
  %s6 = sld [smem:[#allocation0]]
  $region73: #{tpu_custom_call.1} parent=0
    _
  %s8 = ssub.s32 1, %s6
  %s9 = scalar_select 0, %s8, %s6
  $region1: #{tpu_custom_call.1} parent=0
    #allocation2 [shape = 'u8[524288]{0}', space=vmem, size = 0x80000, scoped, tag = 'input window, operand 0']
    #allocation3 [shape = 's32[2]{0}', space=sflag, size = 0x8, scoped, tag = 'scoped memory for tpu_custom_call.1']
    #allocation4 [shape = 's32[2]{0}', space=sflag, size = 0x8, scoped, tag = 'scoped memory for tpu_custom_call.1']
    #allocation5 [shape = 'u8[524288]{0}', space=vmem, size = 0x80000, scoped, tag = 'input window, operand 1']
    #allocation6 [shape = 's32[2]{0}', space=sflag, size = 0x8, scoped, tag = 'scoped memory for tpu_custom_call.1']
    #allocation7 [shape = 'u8[524288]{0}', space=vmem, size = 0x80000, scoped, tag = 'input window, operand 2']
    #allocation8 [shape = 'u8[65536]{0}', space=vmem, size = 0x10000, scoped, tag = 'input window, operand 3, single buffered']
    #allocation9 [shape = 's32[1]{0}', space=sflag, size = 0x4, scoped, tag = 'scoped memory for tpu_custom_call.1']
    #allocation10 [shape = 'u8[524288]{0}', space=vmem, size = 0x80000, scoped, tag = 'input window, operand 4']
    #allocation11 [shape = 'u8[524288]{0}', space=vmem, size = 0x80000, scoped, tag = 'output window, operand 0']
    %10 = vsyncpa [#allocation3], 0
    %s11 = scalar_lea.sflag [#allocation3], 1
    %12 = vsyncpa %s11, 0
    %13 = vsyncpa [#allocation6], 0
    %s14 = scalar_lea.sflag [#allocation6], 1
    %15 = vsyncpa %s14, 0
    %16 = vsyncpa [#allocation9], 0
    %17 = vsyncpa [#allocation4], 0
    %s18 = scalar_lea.sflag [#allocation4], 1
    %19 = vsyncpa %s18, 0
    loop: start=0, step=1, limit=4
    $region2: #{tpu_custom_call.1} parent=1 // loop_pre_header
      _
    $region3: #{tpu_custom_call.1} parent=1 // loop_header
      %s21 = sphi 0, %s25
      %p22 = scmp.ge.s32.totalorder %s21, 4
      %s31 = sphi 0, %s33
      %s34 = sphi 0, %s31
      %s35 = sphi 0, %s34
      %s51 = sphi 0, %s35
      %s57 = sphi 0, %s59
      %s60 = sphi 0, %s57
      %s61 = sphi 0, %s60
      %s77 = sphi 0, %s61
      %s83 = sphi 0, %s85
      %s86 = sphi 0, %s83
      %s87 = sphi 0, %s86
      %s103 = sphi 0, %s87
      %s107 = sphi 0, %s107
      %s109 = sphi 0, %s107
      %s110 = sphi 0, %s109
      %s124 = sphi 0, %s110
      %s130 = sphi 0, %s132
      %s133 = sphi 0, %s130
      %s134 = sphi 0, %s133
      %s150 = sphi 0, %s134
      %s156 = sphi 0, %s158
      %s159 = sphi 0, %s156
      %s160 = sphi 0, %s159
      %s176 = sphi 0, %s160
    $region4: #{tpu_custom_call.1} parent=1 // loop_header_branch
      %24 = sbr.rel (%p22) target = $region8
    $region5: #{tpu_custom_call.1} parent=1 // loop_body
      %s26 = ssub.s32 %s21, 1
      %s27 = ssub.s32 %s21, 2
      %s28 = sadd.s32 %s21, 1
      %s29 = ssub.s32 %s21, %s28
      %p30 = scmp.eq.s32.totalorder %s29, 0
      %s32 = sadd.s32 %s31, 1
      %s33 = scalar_select %p30, %s31, %s32
      %p36 = pneg %p30
      %p37 = scmp.eq.s32.totalorder %s21, 1
      %p38 = por %p36, %p37
      %p39 = scmp.ne.s32.totalorder %s31, %s34
      %p40 = scmp.eq.s32.totalorder %s21, 0
      %p41 = por %p39, %p40
      %p42 = scmp.ne.s32.totalorder %s31, %s34
      %p43 = scmp.eq.s32.totalorder %s26, 1
      %p44 = por %p42, %p43
      %p45 = scmp.ne.s32.totalorder %s34, %s35
      %p46 = scmp.eq.s32.totalorder %s26, 0
      %p47 = por %p45, %p46
      %p48 = scmp.ne.s32.totalorder %s34, %s35
      %p49 = scmp.eq.s32.totalorder %s27, 1
      %p50 = por %p48, %p49
      %p52 = scmp.ne.s32.totalorder %s35, %s51
      %p53 = scmp.eq.s32.totalorder %s27, 0
      %p54 = por %p52, %p53
      %s55 = ssub.s32 %s21, %s28
      %p56 = scmp.eq.s32.totalorder %s55, 0
      %s58 = sadd.s32 %s57, 1
      %s59 = scalar_select %p56, %s57, %s58
      %p62 = pneg %p56
      %p63 = scmp.eq.s32.totalorder %s21, 1
      %p64 = por %p62, %p63
      %p65 = scmp.ne.s32.totalorder %s57, %s60
      %p66 = scmp.eq.s32.totalorder %s21, 0
      %p67 = por %p65, %p66
      %p68 = scmp.ne.s32.totalorder %s57, %s60
      %p69 = scmp.eq.s32.totalorder %s26, 1
      %p70 = por %p68, %p69
      %p71 = scmp.ne.s32.totalorder %s60, %s61
      %p72 = scmp.eq.s32.totalorder %s26, 0
      %p73 = por %p71, %p72
      %p74 = scmp.ne.s32.totalorder %s60, %s61
      %p75 = scmp.eq.s32.totalorder %s27, 1
      %p76 = por %p74, %p75
      %p78 = scmp.ne.s32.totalorder %s61, %s77
      %p79 = scmp.eq.s32.totalorder %s27, 0
      %p80 = por %p78, %p79
      %s81 = ssub.s32 %s21, %s28
      %p82 = scmp.eq.s32.totalorder %s81, 0
      %s84 = sadd.s32 %s83, 1
      %s85 = scalar_select %p82, %s83, %s84
      %p88 = pneg %p82
      %p89 = scmp.eq.s32.totalorder %s21, 1
      %p90 = por %p88, %p89
      %p91 = scmp.ne.s32.totalorder %s83, %s86
      %p92 = scmp.eq.s32.totalorder %s21, 0
      %p93 = por %p91, %p92
      %p94 = scmp.ne.s32.totalorder %s83, %s86
      %p95 = scmp.eq.s32.totalorder %s26, 1
      %p96 = por %p94, %p95
      %p97 = scmp.ne.s32.totalorder %s86, %s87
      %p98 = scmp.eq.s32.totalorder %s26, 0
      %p99 = por %p97, %p98
      %p100 = scmp.ne.s32.totalorder %s86, %s87
      %p101 = scmp.eq.s32.totalorder %s27, 1
      %p102 = por %p100, %p101
      %p104 = scmp.ne.s32.totalorder %s87, %s103
      %p105 = scmp.eq.s32.totalorder %s27, 0
      %p106 = por %p104, %p105
      %s108 = sadd.s32 %s107, 1
      %p111 = scmp.eq.s32.totalorder %s21, 1
      %p112 = scmp.ne.s32.totalorder %s107, %s109
      %p113 = scmp.eq.s32.totalorder %s21, 0
      %p114 = por %p112, %p113
      %p115 = scmp.ne.s32.totalorder %s107, %s109
      %p116 = scmp.eq.s32.totalorder %s26, 1
      %p117 = por %p115, %p116
      %p118 = scmp.ne.s32.totalorder %s109, %s110
      %p119 = scmp.eq.s32.totalorder %s26, 0
      %p120 = por %p118, %p119
      %p121 = scmp.ne.s32.totalorder %s109, %s110
      %p122 = scmp.eq.s32.totalorder %s27, 1
      %p123 = por %p121, %p122
      %p125 = scmp.ne.s32.totalorder %s110, %s124
      %p126 = scmp.eq.s32.totalorder %s27, 0
      %p127 = por %p125, %p126
      %s128 = ssub.s32 %s21, %s28
      %p129 = scmp.eq.s32.totalorder %s128, 0
      %s131 = sadd.s32 %s130, 1
      %s132 = scalar_select %p129, %s130, %s131
      %p135 = pneg %p129
      %p136 = scmp.eq.s32.totalorder %s21, 1
      %p137 = por %p135, %p136
      %p138 = scmp.ne.s32.totalorder %s130, %s133
      %p139 = scmp.eq.s32.totalorder %s21, 0
      %p140 = por %p138, %p139
      %p141 = scmp.ne.s32.totalorder %s130, %s133
      %p142 = scmp.eq.s32.totalorder %s26, 1
      %p143 = por %p141, %p142
      %p144 = scmp.ne.s32.totalorder %s133, %s134
      %p145 = scmp.eq.s32.totalorder %s26, 0
      %p146 = por %p144, %p145
      %p147 = scmp.ne.s32.totalorder %s133, %s134
      %p148 = scmp.eq.s32.totalorder %s27, 1
      %p149 = por %p147, %p148
      %p151 = scmp.ne.s32.totalorder %s134, %s150
      %p152 = scmp.eq.s32.totalorder %s27, 0
      %p153 = por %p151, %p152
      %s154 = ssub.s32 %s21, %s28
      %p155 = scmp.eq.s32.totalorder %s154, 0
      %s157 = sadd.s32 %s156, 1
      %s158 = scalar_select %p155, %s156, %s157
      %p161 = pneg %p155
      %p162 = scmp.eq.s32.totalorder %s21, 1
      %p163 = por %p161, %p162
      %p164 = scmp.ne.s32.totalorder %s156, %s159
      %p165 = scmp.eq.s32.totalorder %s21, 0
      %p166 = por %p164, %p165
      %p167 = scmp.ne.s32.totalorder %s156, %s159
      %p168 = scmp.eq.s32.totalorder %s26, 1
      %p169 = por %p167, %p168
      %p170 = scmp.ne.s32.totalorder %s159, %s160
      %p171 = scmp.eq.s32.totalorder %s26, 0
      %p172 = por %p170, %p171
      %p173 = scmp.ne.s32.totalorder %s159, %s160
      %p174 = scmp.eq.s32.totalorder %s27, 1
      %p175 = por %p173, %p174
      %p177 = scmp.ne.s32.totalorder %s160, %s176
      %p178 = scmp.eq.s32.totalorder %s27, 0
      %p179 = por %p177, %p178
      %p180 = scmp.le.s32.totalorder 1, %s21
      %p181 = scmp.lt.s32.totalorder %s21, 3
      %p182 = pnand %p180, %p181
      %p183 = pneg %p182
      // Predicated region
      $region9: #{tpu_custom_call.1} parent=5 // pred_check
        _
      $region10: #{tpu_custom_call.1} parent=5 // pred_check_branch
        %185 = sbr.rel (%p182) target = $region12
      $region11: #{tpu_custom_call.1} parent=5 // pred_region
        %s186 = ssub.s32 %s21, 1
        // Predicated region
        $region13: #{tpu_custom_call.1} parent=11 // pred_check
          %p187 = pneg %p120
        $region14: #{tpu_custom_call.1} parent=11 // pred_check_branch
          %189 = sbr.rel (%p187) target = $region16
        $region15: #{tpu_custom_call.1} parent=11 // pred_region
          %s191 = ssub.s32 2048, 2048
          %192 = vsyncadd [#allocation9], %s191
          %s193 = sshll.u32 [#allocation8], 4
          %s194 = int_to_ptr.vmem [resolvable:$true] %s193
          %199 = dma.hbm_to_vmem [thread:$0]  %s3, 2048, %s194, [#allocation9], 128, 128, 8
        $region16: #{tpu_custom_call.1} parent=11 // pred_fallthru
          _
      $region12: #{tpu_custom_call.1} parent=5 // pred_fallthru
        _
      %p200 = scmp.lt.s32.totalorder %s21, 2
      // Predicated region
      $region17: #{tpu_custom_call.1} parent=5 // pred_check
        %p201 = pneg %p200
      $region18: #{tpu_custom_call.1} parent=5 // pred_check_branch
        %203 = sbr.rel (%p201) target = $region20
      $region19: #{tpu_custom_call.1} parent=5 // pred_region
        // Predicated region
        $region21: #{tpu_custom_call.1} parent=19 // pred_check
          %p204 = pneg %p41
        $region22: #{tpu_custom_call.1} parent=19 // pred_check_branch
          %206 = sbr.rel (%p204) target = $region24
        $region23: #{tpu_custom_call.1} parent=19 // pred_region
          %s207 = sand.u32 %s21, 1
          %s208 = scalar_lea.sflag [#allocation3], %s207
          %s209 = sand.u32 %s31, 1
          %s210 = smul.addr %s209, 512
          %s211 = scalar_lea.vmem [#allocation2], %s210
          %s212 = smul.u32 4, %s21
          %s214 = ssub.s32 8192, 8192
          %215 = vsyncadd %s208, %s214
          %s216 = smul.addr %s212, 16
          %s217 = smul.addr %s216, 128
          %s218 = scalar_lea.hbm %s0, %s217
          %s219 = sshll.u32 %s211, 4
          %s220 = int_to_ptr.vmem [resolvable:$true] %s219
          %225 = dma.hbm_to_vmem [thread:$0]  %s218, 8192, %s220, %s208, 128, 128, 8
        $region24: #{tpu_custom_call.1} parent=19 // pred_fallthru
          _
        // Predicated region
        $region25: #{tpu_custom_call.1} parent=19 // pred_check
          %p226 = pneg %p67
        $region26: #{tpu_custom_call.1} parent=19 // pred_check_branch
          %228 = sbr.rel (%p226) target = $region28
        $region27: #{tpu_custom_call.1} parent=19 // pred_region
          %s229 = sand.u32 %s21, 1
          %s230 = scalar_lea.sflag [#allocation6], %s229
          %s231 = sand.u32 %s57, 1
          %s232 = smul.addr %s231, 512
          %s233 = scalar_lea.vmem [#allocation5], %s232
          %s234 = smul.u32 4, %s21
          %s236 = ssub.s32 8192, 8192
          %237 = vsyncadd %s230, %s236
          %s238 = smul.addr %s234, 16
          %s239 = smul.addr %s238, 128
          %s240 = scalar_lea.hbm %s1, %s239
          %s241 = sshll.u32 %s233, 4
          %s242 = int_to_ptr.vmem [resolvable:$true] %s241
          %247 = dma.hbm_to_vmem [thread:$0]  %s240, 8192, %s242, %s230, 128, 128, 8
        $region28: #{tpu_custom_call.1} parent=19 // pred_fallthru
          _
        // Predicated region
        $region29: #{tpu_custom_call.1} parent=19 // pred_check
          %p248 = pneg %p93
        $region30: #{tpu_custom_call.1} parent=19 // pred_check_branch
          %250 = sbr.rel (%p248) target = $region32
        $region31: #{tpu_custom_call.1} parent=19 // pred_region
          %s251 = sand.u32 %s21, 1
          %s252 = scalar_lea.sflag [#allocation6], %s251
          %s253 = sand.u32 %s83, 1
          %s254 = smul.addr %s253, 512
          %s255 = scalar_lea.vmem [#allocation7], %s254
          %s256 = smul.u32 4, %s21
          %s258 = ssub.s32 8192, 8192
          %259 = vsyncadd %s252, %s258
          %s260 = smul.addr %s256, 16
          %s261 = smul.addr %s260, 128
          %s262 = scalar_lea.hbm %s2, %s261
          %s263 = sshll.u32 %s255, 4
          %s264 = int_to_ptr.vmem [resolvable:$true] %s263
          %269 = dma.hbm_to_vmem [thread:$0]  %s262, 8192, %s264, %s252, 128, 128, 8
        $region32: #{tpu_custom_call.1} parent=19 // pred_fallthru
          _
        // Predicated region
        $region33: #{tpu_custom_call.1} parent=19 // pred_check
          %p270 = pneg %p140
        $region34: #{tpu_custom_call.1} parent=19 // pred_check_branch
          %272 = sbr.rel (%p270) target = $region36
        $region35: #{tpu_custom_call.1} parent=19 // pred_region
          %s273 = sand.u32 %s21, 1
          %s274 = scalar_lea.sflag [#allocation3], %s273
          %s275 = sand.u32 %s130, 1
          %s276 = smul.addr %s275, 512
          %s277 = scalar_lea.vmem [#allocation10], %s276
          %s278 = smul.u32 4, %s21
          %s280 = ssub.s32 8192, 8192
          %281 = vsyncadd %s274, %s280
          %s282 = smul.addr %s278, 16
          %s283 = smul.addr %s282, 128
          %s284 = scalar_lea.hbm %s4, %s283
          %s285 = sshll.u32 %s277, 4
          %s286 = int_to_ptr.vmem [resolvable:$true] %s285
          %291 = dma.hbm_to_vmem [thread:$0]  %s284, 8192, %s286, %s274, 128, 128, 8
        $region36: #{tpu_custom_call.1} parent=19 // pred_fallthru
          _
      $region20: #{tpu_custom_call.1} parent=5 // pred_fallthru
        _
      %p292 = scmp.le.s32.totalorder 1, %s21
      %p293 = scmp.lt.s32.totalorder %s21, 3
      %p294 = pnand %p292, %p293
      %p295 = pneg %p294
      // Predicated region
      $region37: #{tpu_custom_call.1} parent=5 // pred_check
        _
      $region38: #{tpu_custom_call.1} parent=5 // pred_check_branch
        %297 = sbr.rel (%p294) target = $region40
      $region39: #{tpu_custom_call.1} parent=5 // pred_region
        %s298 = ssub.s32 %s21, 1
        %s299 = sand.u32 %s26, 1
        %s300 = scalar_lea.sflag [#allocation3], %s299
        %s301 = sand.u32 %s34, 1
        %s302 = smul.addr %s301, 512
        %s303 = scalar_lea.vmem [#allocation2], %s302
        // Predicated region
        $region41: #{tpu_custom_call.1} parent=39 // pred_check
          %p304 = pneg %p47
        $region42: #{tpu_custom_call.1} parent=39 // pred_check_branch
          %306 = sbr.rel (%p304) target = $region44
        $region43: #{tpu_custom_call.1} parent=39 // pred_region
          %307 = dma.done %s300, 8192
        $region44: #{tpu_custom_call.1} parent=39 // pred_fallthru
          _
        %s308 = sand.u32 %s26, 1
        %s309 = scalar_lea.sflag [#allocation6], %s308
        %s310 = sand.u32 %s60, 1
        %s311 = smul.addr %s310, 512
        %s312 = scalar_lea.vmem [#allocation5], %s311
        // Predicated region
        $region45: #{tpu_custom_call.1} parent=39 // pred_check
          %p313 = pneg %p73
        $region46: #{tpu_custom_call.1} parent=39 // pred_check_branch
          %315 = sbr.rel (%p313) target = $region48
        $region47: #{tpu_custom_call.1} parent=39 // pred_region
          %316 = dma.done %s309, 8192
        $region48: #{tpu_custom_call.1} parent=39 // pred_fallthru
          _
        %s317 = sand.u32 %s26, 1
        %s318 = scalar_lea.sflag [#allocation6], %s317
        %s319 = sand.u32 %s86, 1
        %s320 = smul.addr %s319, 512
        %s321 = scalar_lea.vmem [#allocation7], %s320
        // Predicated region
        $region49: #{tpu_custom_call.1} parent=39 // pred_check
          %p322 = pneg %p99
        $region50: #{tpu_custom_call.1} parent=39 // pred_check_branch
          %324 = sbr.rel (%p322) target = $region52
        $region51: #{tpu_custom_call.1} parent=39 // pred_region
          %325 = dma.done %s318, 8192
        $region52: #{tpu_custom_call.1} parent=39 // pred_fallthru
          _
        // Predicated region
        $region53: #{tpu_custom_call.1} parent=39 // pred_check
          %p326 = pneg %p120
        $region54: #{tpu_custom_call.1} parent=39 // pred_check_branch
          %328 = sbr.rel (%p326) target = $region56
        $region55: #{tpu_custom_call.1} parent=39 // pred_region
          %329 = dma.done [#allocation9], 2048
        $region56: #{tpu_custom_call.1} parent=39 // pred_fallthru
          _
        %s330 = sand.u32 %s26, 1
        %s331 = scalar_lea.sflag [#allocation3], %s330
        %s332 = sand.u32 %s133, 1
        %s333 = smul.addr %s332, 512
        %s334 = scalar_lea.vmem [#allocation10], %s333
        // Predicated region
        $region57: #{tpu_custom_call.1} parent=39 // pred_check
          %p335 = pneg %p146
        $region58: #{tpu_custom_call.1} parent=39 // pred_check_branch
          %337 = sbr.rel (%p335) target = $region60
        $region59: #{tpu_custom_call.1} parent=39 // pred_region
          %338 = dma.done %s331, 8192
        $region60: #{tpu_custom_call.1} parent=39 // pred_fallthru
          _
        %s339 = sand.u32 %s26, 1
        %s340 = scalar_lea.sflag [#allocation3], %s339
        %s341 = sand.u32 %s34, 1
        %s342 = smul.addr %s341, 512
        %s343 = scalar_lea.vmem [#allocation2], %s342
        %p344 = pneg %p47
        %p345 = pneg %p44
        %s346 = sand.u32 %s26, 1
        %s347 = scalar_lea.sflag [#allocation6], %s346
        %s348 = sand.u32 %s60, 1
        %s349 = smul.addr %s348, 512
        %s350 = scalar_lea.vmem [#allocation5], %s349
        %p351 = pneg %p73
        %p352 = pneg %p70
        %s353 = sand.u32 %s26, 1
        %s354 = scalar_lea.sflag [#allocation6], %s353
        %s355 = sand.u32 %s86, 1
        %s356 = smul.addr %s355, 512
        %s357 = scalar_lea.vmem [#allocation7], %s356
        %p358 = pneg %p99
        %p359 = pneg %p96
        %p360 = pneg %p120
        %p361 = pneg %p117
        %s362 = sand.u32 %s26, 1
        %s363 = scalar_lea.sflag [#allocation3], %s362
        %s364 = sand.u32 %s133, 1
        %s365 = smul.addr %s364, 512
        %s366 = scalar_lea.vmem [#allocation10], %s365
        %p367 = pneg %p146
        %p368 = pneg %p143
        %p369 = pneg %p172
        %p370 = pneg %p169
        %s371 = sand.u32 %s159, 1
        %s372 = scalar_lea.sflag [#allocation4], %s371
        %s373 = sand.u32 %s159, 1
        %s374 = smul.addr %s373, 512
        %s375 = scalar_lea.vmem [#allocation11], %s374
        %s376 = smul.u32 4, %s26
        %s377 = smul.u32 4, %s26
        %s378 = smul.u32 4, %s26
        %s379 = smul.u32 4, %s26
        %s380 = smul.u32 4, %s26
        %v382 = vld [vmem:[%s303] sm:$0xff]
        %v383 = vld [vmem:[%s303 + $0x8] sm:$0xff]
        %v384 = vld [vmem:[%s303 + $0x10] sm:$0xff]
        %v385 = vld [vmem:[%s303 + $0x18] sm:$0xff]
        %v386 = vld [vmem:[%s303 + $0x20] sm:$0xff]
        %v387 = vld [vmem:[%s303 + $0x28] sm:$0xff]
        %v388 = vld [vmem:[%s303 + $0x30] sm:$0xff]
        %v389 = vld [vmem:[%s303 + $0x38] sm:$0xff]
        %v390 = vld [vmem:[%s303 + $0x40] sm:$0xff]
        %v391 = vld [vmem:[%s303 + $0x48] sm:$0xff]
        %v392 = vld [vmem:[%s303 + $0x50] sm:$0xff]
        %v393 = vld [vmem:[%s303 + $0x58] sm:$0xff]
        %v394 = vld [vmem:[%s303 + $0x60] sm:$0xff]
        %v395 = vld [vmem:[%s303 + $0x68] sm:$0xff]
        %v396 = vld [vmem:[%s303 + $0x70] sm:$0xff]
        %v397 = vld [vmem:[%s303 + $0x78] sm:$0xff]
        %v398 = vld [vmem:[%s303 + $0x80] sm:$0xff]
        %v399 = vld [vmem:[%s303 + $0x88] sm:$0xff]
        %v400 = vld [vmem:[%s303 + $0x90] sm:$0xff]
        %v401 = vld [vmem:[%s303 + $0x98] sm:$0xff]
        %v402 = vld [vmem:[%s303 + $0xa0] sm:$0xff]
        %v403 = vld [vmem:[%s303 + $0xa8] sm:$0xff]
        %v404 = vld [vmem:[%s303 + $0xb0] sm:$0xff]
        %v405 = vld [vmem:[%s303 + $0xb8] sm:$0xff]
        %v406 = vld [vmem:[%s303 + $0xc0] sm:$0xff]
        %v407 = vld [vmem:[%s303 + $0xc8] sm:$0xff]
        %v408 = vld [vmem:[%s303 + $0xd0] sm:$0xff]
        %v409 = vld [vmem:[%s303 + $0xd8] sm:$0xff]
        %v410 = vld [vmem:[%s303 + $0xe0] sm:$0xff]
        %v411 = vld [vmem:[%s303 + $0xe8] sm:$0xff]
        %v412 = vld [vmem:[%s303 + $0xf0] sm:$0xff]
        %v413 = vld [vmem:[%s303 + $0xf8] sm:$0xff]
        %v414 = vld [vmem:[%s303 + $0x100] sm:$0xff]
        %v415 = vld [vmem:[%s303 + $0x108] sm:$0xff]
        %v416 = vld [vmem:[%s303 + $0x110] sm:$0xff]
        %v417 = vld [vmem:[%s303 + $0x118] sm:$0xff]
        %v418 = vld [vmem:[%s303 + $0x120] sm:$0xff]
        %v419 = vld [vmem:[%s303 + $0x128] sm:$0xff]
        %v420 = vld [vmem:[%s303 + $0x130] sm:$0xff]
        %v421 = vld [vmem:[%s303 + $0x138] sm:$0xff]
        %v422 = vld [vmem:[%s303 + $0x140] sm:$0xff]
        %v423 = vld [vmem:[%s303 + $0x148] sm:$0xff]
        %v424 = vld [vmem:[%s303 + $0x150] sm:$0xff]
        %v425 = vld [vmem:[%s303 + $0x158] sm:$0xff]
        %v426 = vld [vmem:[%s303 + $0x160] sm:$0xff]
        %v427 = vld [vmem:[%s303 + $0x168] sm:$0xff]
        %v428 = vld [vmem:[%s303 + $0x170] sm:$0xff]
        %v429 = vld [vmem:[%s303 + $0x178] sm:$0xff]
        %v430 = vld [vmem:[%s303 + $0x180] sm:$0xff]
        %v431 = vld [vmem:[%s303 + $0x188] sm:$0xff]
        %v432 = vld [vmem:[%s303 + $0x190] sm:$0xff]
        %v433 = vld [vmem:[%s303 + $0x198] sm:$0xff]
        %v434 = vld [vmem:[%s303 + $0x1a0] sm:$0xff]
        %v435 = vld [vmem:[%s303 + $0x1a8] sm:$0xff]
        %v436 = vld [vmem:[%s303 + $0x1b0] sm:$0xff]
        %v437 = vld [vmem:[%s303 + $0x1b8] sm:$0xff]
        %v438 = vld [vmem:[%s303 + $0x1c0] sm:$0xff]
        %v439 = vld [vmem:[%s303 + $0x1c8] sm:$0xff]
        %v440 = vld [vmem:[%s303 + $0x1d0] sm:$0xff]
        %v441 = vld [vmem:[%s303 + $0x1d8] sm:$0xff]
        %v442 = vld [vmem:[%s303 + $0x1e0] sm:$0xff]
        %v443 = vld [vmem:[%s303 + $0x1e8] sm:$0xff]
        %v444 = vld [vmem:[%s303 + $0x1f0] sm:$0xff]
        %v445 = vld [vmem:[%s303 + $0x1f8] sm:$0xff]
        %v446 = vmul.f32 %v382, 0.088388346
        %v447 = vmul.f32 %v383, 0.088388346
        %v448 = vmul.f32 %v384, 0.088388346
        %v449 = vmul.f32 %v385, 0.088388346
        %v450 = vmul.f32 %v386, 0.088388346
        %v451 = vmul.f32 %v387, 0.088388346
        %v452 = vmul.f32 %v388, 0.088388346
        %v453 = vmul.f32 %v389, 0.088388346
        %v454 = vmul.f32 %v390, 0.088388346
        %v455 = vmul.f32 %v391, 0.088388346
        %v456 = vmul.f32 %v392, 0.088388346
        %v457 = vmul.f32 %v393, 0.088388346
        %v458 = vmul.f32 %v394, 0.088388346
        %v459 = vmul.f32 %v395, 0.088388346
        %v460 = vmul.f32 %v396, 0.088388346
        %v461 = vmul.f32 %v397, 0.088388346
        %v462 = vmul.f32 %v398, 0.088388346
        %v463 = vmul.f32 %v399, 0.088388346
        %v464 = vmul.f32 %v400, 0.088388346
        %v465 = vmul.f32 %v401, 0.088388346
        %v466 = vmul.f32 %v402, 0.088388346
        %v467 = vmul.f32 %v403, 0.088388346
        %v468 = vmul.f32 %v404, 0.088388346
        %v469 = vmul.f32 %v405, 0.088388346
        %v470 = vmul.f32 %v406, 0.088388346
        %v471 = vmul.f32 %v407, 0.088388346
        %v472 = vmul.f32 %v408, 0.088388346
        %v473 = vmul.f32 %v409, 0.088388346
        %v474 = vmul.f32 %v410, 0.088388346
        %v475 = vmul.f32 %v411, 0.088388346
        %v476 = vmul.f32 %v412, 0.088388346
        %v477 = vmul.f32 %v413, 0.088388346
        %v478 = vmul.f32 %v414, 0.088388346
        %v479 = vmul.f32 %v415, 0.088388346
        %v480 = vmul.f32 %v416, 0.088388346
        %v481 = vmul.f32 %v417, 0.088388346
        %v482 = vmul.f32 %v418, 0.088388346
        %v483 = vmul.f32 %v419, 0.088388346
        %v484 = vmul.f32 %v420, 0.088388346
        %v485 = vmul.f32 %v421, 0.088388346
        %v486 = vmul.f32 %v422, 0.088388346
        %v487 = vmul.f32 %v423, 0.088388346
        %v488 = vmul.f32 %v424, 0.088388346
        %v489 = vmul.f32 %v425, 0.088388346
        %v490 = vmul.f32 %v426, 0.088388346
        %v491 = vmul.f32 %v427, 0.088388346
        %v492 = vmul.f32 %v428, 0.088388346
        %v493 = vmul.f32 %v429, 0.088388346
        %v494 = vmul.f32 %v430, 0.088388346
        %v495 = vmul.f32 %v431, 0.088388346
        %v496 = vmul.f32 %v432, 0.088388346
        %v497 = vmul.f32 %v433, 0.088388346
        %v498 = vmul.f32 %v434, 0.088388346
        %v499 = vmul.f32 %v435, 0.088388346
        %v500 = vmul.f32 %v436, 0.088388346
        %v501 = vmul.f32 %v437, 0.088388346
        %v502 = vmul.f32 %v438, 0.088388346
        %v503 = vmul.f32 %v439, 0.088388346
        %v504 = vmul.f32 %v440, 0.088388346
        %v505 = vmul.f32 %v441, 0.088388346
        %v506 = vmul.f32 %v442, 0.088388346
        %v507 = vmul.f32 %v443, 0.088388346
        %v508 = vmul.f32 %v444, 0.088388346
        %v509 = vmul.f32 %v445, 0.088388346
        %v510 = vpack.c.bf16 %v447, %v446
        %v511 = vpack.c.bf16 %v449, %v448
        %v512 = vpack.c.bf16 %v451, %v450
        %v513 = vpack.c.bf16 %v453, %v452
        %v514 = vpack.c.bf16 %v455, %v454
        %v515 = vpack.c.bf16 %v457, %v456
        %v516 = vpack.c.bf16 %v459, %v458
        %v517 = vpack.c.bf16 %v461, %v460
        %v518 = vpack.c.bf16 %v463, %v462
        %v519 = vpack.c.bf16 %v465, %v464
        %v520 = vpack.c.bf16 %v467, %v466
        %v521 = vpack.c.bf16 %v469, %v468
        %v522 = vpack.c.bf16 %v471, %v470
        %v523 = vpack.c.bf16 %v473, %v472
        %v524 = vpack.c.bf16 %v475, %v474
        %v525 = vpack.c.bf16 %v477, %v476
        %v526 = vpack.c.bf16 %v479, %v478
        %v527 = vpack.c.bf16 %v481, %v480
        %v528 = vpack.c.bf16 %v483, %v482
        %v529 = vpack.c.bf16 %v485, %v484
        %v530 = vpack.c.bf16 %v487, %v486
        %v531 = vpack.c.bf16 %v489, %v488
        %v532 = vpack.c.bf16 %v491, %v490
        %v533 = vpack.c.bf16 %v493, %v492
        %v534 = vpack.c.bf16 %v495, %v494
        %v535 = vpack.c.bf16 %v497, %v496
        %v536 = vpack.c.bf16 %v499, %v498
        %v537 = vpack.c.bf16 %v501, %v500
        %v538 = vpack.c.bf16 %v503, %v502
        %v539 = vpack.c.bf16 %v505, %v504
        %v540 = vpack.c.bf16 %v507, %v506
        %v541 = vpack.c.bf16 %v509, %v508
        %v542 = vld [vmem:[%s312] sm:$0xff]
        %v543 = vld [vmem:[%s312 + $0x8] sm:$0xff]
        %v544 = vld [vmem:[%s312 + $0x10] sm:$0xff]
        %v545 = vld [vmem:[%s312 + $0x18] sm:$0xff]
        %v546 = vld [vmem:[%s312 + $0x20] sm:$0xff]
        %v547 = vld [vmem:[%s312 + $0x28] sm:$0xff]
        %v548 = vld [vmem:[%s312 + $0x30] sm:$0xff]
        %v549 = vld [vmem:[%s312 + $0x38] sm:$0xff]
        %v550 = vld [vmem:[%s312 + $0x40] sm:$0xff]
        %v551 = vld [vmem:[%s312 + $0x48] sm:$0xff]
        %v552 = vld [vmem:[%s312 + $0x50] sm:$0xff]
        %v553 = vld [vmem:[%s312 + $0x58] sm:$0xff]
        %v554 = vld [vmem:[%s312 + $0x60] sm:$0xff]
        %v555 = vld [vmem:[%s312 + $0x68] sm:$0xff]
        %v556 = vld [vmem:[%s312 + $0x70] sm:$0xff]
        %v557 = vld [vmem:[%s312 + $0x78] sm:$0xff]
        %v558 = vld [vmem:[%s312 + $0x80] sm:$0xff]
        %v559 = vld [vmem:[%s312 + $0x88] sm:$0xff]
        %v560 = vld [vmem:[%s312 + $0x90] sm:$0xff]
        %v561 = vld [vmem:[%s312 + $0x98] sm:$0xff]
        %v562 = vld [vmem:[%s312 + $0xa0] sm:$0xff]
        %v563 = vld [vmem:[%s312 + $0xa8] sm:$0xff]
        %v564 = vld [vmem:[%s312 + $0xb0] sm:$0xff]
        %v565 = vld [vmem:[%s312 + $0xb8] sm:$0xff]
        %v566 = vld [vmem:[%s312 + $0xc0] sm:$0xff]
        %v567 = vld [vmem:[%s312 + $0xc8] sm:$0xff]
        %v568 = vld [vmem:[%s312 + $0xd0] sm:$0xff]
        %v569 = vld [vmem:[%s312 + $0xd8] sm:$0xff]
        %v570 = vld [vmem:[%s312 + $0xe0] sm:$0xff]
        %v571 = vld [vmem:[%s312 + $0xe8] sm:$0xff]
        %v572 = vld [vmem:[%s312 + $0xf0] sm:$0xff]
        %v573 = vld [vmem:[%s312 + $0xf8] sm:$0xff]
        %v574 = vld [vmem:[%s312 + $0x100] sm:$0xff]
        %v575 = vld [vmem:[%s312 + $0x108] sm:$0xff]
        %v576 = vld [vmem:[%s312 + $0x110] sm:$0xff]
        %v577 = vld [vmem:[%s312 + $0x118] sm:$0xff]
        %v578 = vld [vmem:[%s312 + $0x120] sm:$0xff]
        %v579 = vld [vmem:[%s312 + $0x128] sm:$0xff]
        %v580 = vld [vmem:[%s312 + $0x130] sm:$0xff]
        %v581 = vld [vmem:[%s312 + $0x138] sm:$0xff]
        %v582 = vld [vmem:[%s312 + $0x140] sm:$0xff]
        %v583 = vld [vmem:[%s312 + $0x148] sm:$0xff]
        %v584 = vld [vmem:[%s312 + $0x150] sm:$0xff]
        %v585 = vld [vmem:[%s312 + $0x158] sm:$0xff]
        %v586 = vld [vmem:[%s312 + $0x160] sm:$0xff]
        %v587 = vld [vmem:[%s312 + $0x168] sm:$0xff]
        %v588 = vld [vmem:[%s312 + $0x170] sm:$0xff]
        %v589 = vld [vmem:[%s312 + $0x178] sm:$0xff]
        %v590 = vld [vmem:[%s312 + $0x180] sm:$0xff]
        %v591 = vld [vmem:[%s312 + $0x188] sm:$0xff]
        %v592 = vld [vmem:[%s312 + $0x190] sm:$0xff]
        %v593 = vld [vmem:[%s312 + $0x198] sm:$0xff]
        %v594 = vld [vmem:[%s312 + $0x1a0] sm:$0xff]
        %v595 = vld [vmem:[%s312 + $0x1a8] sm:$0xff]
        %v596 = vld [vmem:[%s312 + $0x1b0] sm:$0xff]
        %v597 = vld [vmem:[%s312 + $0x1b8] sm:$0xff]
        %v598 = vld [vmem:[%s312 + $0x1c0] sm:$0xff]
        %v599 = vld [vmem:[%s312 + $0x1c8] sm:$0xff]
        %v600 = vld [vmem:[%s312 + $0x1d0] sm:$0xff]
        %v601 = vld [vmem:[%s312 + $0x1d8] sm:$0xff]
        %v602 = vld [vmem:[%s312 + $0x1e0] sm:$0xff]
        %v603 = vld [vmem:[%s312 + $0x1e8] sm:$0xff]
        %v604 = vld [vmem:[%s312 + $0x1f0] sm:$0xff]
        %v605 = vld [vmem:[%s312 + $0x1f8] sm:$0xff]
        %v606 = vpack.c.bf16 %v543, %v542
        %v607 = vpack.c.bf16 %v545, %v544
        %v608 = vpack.c.bf16 %v547, %v546
        %v609 = vpack.c.bf16 %v549, %v548
        %v610 = vpack.c.bf16 %v551, %v550
        %v611 = vpack.c.bf16 %v553, %v552
        %v612 = vpack.c.bf16 %v555, %v554
        %v613 = vpack.c.bf16 %v557, %v556
        %v614 = vpack.c.bf16 %v559, %v558
        %v615 = vpack.c.bf16 %v561, %v560
        %v616 = vpack.c.bf16 %v563, %v562
        %v617 = vpack.c.bf16 %v565, %v564
        %v618 = vpack.c.bf16 %v567, %v566
        %v619 = vpack.c.bf16 %v569, %v568
        %v620 = vpack.c.bf16 %v571, %v570
        %v621 = vpack.c.bf16 %v573, %v572
        %v622 = vpack.c.bf16 %v575, %v574
        %v623 = vpack.c.bf16 %v577, %v576
        %v624 = vpack.c.bf16 %v579, %v578
        %v625 = vpack.c.bf16 %v581, %v580
        %v626 = vpack.c.bf16 %v583, %v582
        %v627 = vpack.c.bf16 %v585, %v584
        %v628 = vpack.c.bf16 %v587, %v586
        %v629 = vpack.c.bf16 %v589, %v588
        %v630 = vpack.c.bf16 %v591, %v590
        %v631 = vpack.c.bf16 %v593, %v592
        %v632 = vpack.c.bf16 %v595, %v594
        %v633 = vpack.c.bf16 %v597, %v596
        %v634 = vpack.c.bf16 %v599, %v598
        %v635 = vpack.c.bf16 %v601, %v600
        %v636 = vpack.c.bf16 %v603, %v602
        %v637 = vpack.c.bf16 %v605, %v604
        %v638 = vld [vmem:[#allocation8] sm:$0xff]
        %v639 = vld [vmem:[#allocation8 + $0x8] sm:$0xff]
        %v640 = vld [vmem:[#allocation8 + $0x10] sm:$0xff]
        %v641 = vld [vmem:[#allocation8 + $0x18] sm:$0xff]
        %v642 = vld [vmem:[#allocation8 + $0x20] sm:$0xff]
        %v643 = vld [vmem:[#allocation8 + $0x28] sm:$0xff]
        %v644 = vld [vmem:[#allocation8 + $0x30] sm:$0xff]
        %v645 = vld [vmem:[#allocation8 + $0x38] sm:$0xff]
        %v646 = vld [vmem:[#allocation8 + $0x40] sm:$0xff]
        %v647 = vld [vmem:[#allocation8 + $0x48] sm:$0xff]
        %v648 = vld [vmem:[#allocation8 + $0x50] sm:$0xff]
        %v649 = vld [vmem:[#allocation8 + $0x58] sm:$0xff]
        %v650 = vld [vmem:[#allocation8 + $0x60] sm:$0xff]
        %v651 = vld [vmem:[#allocation8 + $0x68] sm:$0xff]
        %v652 = vld [vmem:[#allocation8 + $0x70] sm:$0xff]
        %v653 = vld [vmem:[#allocation8 + $0x78] sm:$0xff]
        %654 = vmatprep.subr.bf16.mxu0 0
        %655 = vmatpush1.bf16.xpose.msra.mxu0 %v613
        %656 = vmatprep.subr.bf16.mxu0 0
        %657 = vmatpush1.bf16.xpose.msra.mxu0 %v612
        %658 = vmatprep.subr.bf16.mxu0 0
        %659 = vmatpush1.bf16.xpose.msra.mxu0 %v611
        %660 = vmatprep.subr.bf16.mxu0 0
        %661 = vmatpush1.bf16.xpose.msra.mxu0 %v610
        %662 = vmatprep.subr.bf16.mxu0 0
        %663 = vmatpush1.bf16.xpose.msra.mxu0 %v609
        %664 = vmatprep.subr.bf16.mxu0 0
        %665 = vmatpush1.bf16.xpose.msra.mxu0 %v608
        %666 = vmatprep.subr.bf16.mxu0 0
        %667 = vmatpush1.bf16.xpose.msra.mxu0 %v607
        %668 = vmatprep.subr.bf16.mxu0 0
        %669 = vmatpush1.bf16.xpose.msra.mxu0 %v606
        %670 = vmatprep.subr.bf16.mxu0 0
        %671 = vmatpush2.bf16.xpose.msra.mxu0 0
        %672 = vmatprep.subr.bf16.mxu0 0
        %673 = vmatpush2.bf16.xpose.msra.mxu0 0
        %674 = vmatprep.subr.bf16.mxu0 0
        %675 = vmatpush2.bf16.xpose.msra.mxu0 0
        %676 = vmatprep.subr.bf16.mxu0 0
        %677 = vmatpush2.bf16.xpose.msra.mxu0 0
        %678 = vmatprep.subr.bf16.mxu0 0
        %679 = vmatpush2.bf16.xpose.msra.mxu0 0
        %680 = vmatprep.subr.bf16.mxu0 0
        %681 = vmatpush2.bf16.xpose.msra.mxu0 0
        %682 = vmatprep.subr.bf16.mxu0 0
        %683 = vmatpush2.bf16.xpose.msra.mxu0 0
        %684 = vmatprep.subr.bf16.mxu0 0
        %685 = vmatpush2.bf16.xpose.msra.mxu0 0
        %686 = vmatprep.mubr.bf16.mxu0 0
        %687 = vmatmul.mubr.bf16.gmra.mxu0 %v510
        %v688 = vpop.f32.mrf.mxu0
        %v689 = vadd.f32 %v638, %v688
        %v690 = vpop.f32.mrf.mxu0
        %v691 = vpop.f32.mrf.mxu0
        %v692 = vadd.f32 %v639, %v691
        %v693 = vpop.f32.mrf.mxu0
        %694 = vmatprep.mubr.bf16.mxu0 0
        %695 = vmatmul.mubr.bf16.gmra.mxu0 %v511
        %v696 = vpop.f32.mrf.mxu0
        %v697 = vadd.f32 %v640, %v696
        %v698 = vpop.f32.mrf.mxu0
        %v699 = vpop.f32.mrf.mxu0
        %v700 = vadd.f32 %v641, %v699
        %v701 = vpop.f32.mrf.mxu0
        %702 = vmatprep.mubr.bf16.mxu0 0
        %703 = vmatmul.mubr.bf16.gmra.mxu0 %v512
        %v704 = vpop.f32.mrf.mxu0
        %v705 = vadd.f32 %v642, %v704
        %v706 = vpop.f32.mrf.mxu0
        %v707 = vpop.f32.mrf.mxu0
        %v708 = vadd.f32 %v643, %v707
        %v709 = vpop.f32.mrf.mxu0
        %710 = vmatprep.mubr.bf16.mxu0 0
        %711 = vmatmul.mubr.bf16.gmra.mxu0 %v513
        %v712 = vpop.f32.mrf.mxu0
        %v713 = vadd.f32 %v644, %v712
        %v714 = vpop.f32.mrf.mxu0
        %v715 = vpop.f32.mrf.mxu0
        %v716 = vadd.f32 %v645, %v715
        %v717 = vpop.f32.mrf.mxu0
        %718 = vmatprep.mubr.bf16.mxu0 0
        %719 = vmatmul.mubr.bf16.gmra.mxu0 %v514
        %v720 = vpop.f32.mrf.mxu0
        %v721 = vadd.f32 %v646, %v720
        %v722 = vpop.f32.mrf.mxu0
        %v723 = vpop.f32.mrf.mxu0
        %v724 = vadd.f32 %v647, %v723
        %v725 = vpop.f32.mrf.mxu0
        %726 = vmatprep.mubr.bf16.mxu0 0
        %727 = vmatmul.mubr.bf16.gmra.mxu0 %v515
        %v728 = vpop.f32.mrf.mxu0
        %v729 = vadd.f32 %v648, %v728
        %v730 = vpop.f32.mrf.mxu0
        %v731 = vpop.f32.mrf.mxu0
        %v732 = vadd.f32 %v649, %v731
        %v733 = vpop.f32.mrf.mxu0
        %734 = vmatprep.mubr.bf16.mxu0 0
        %735 = vmatmul.mubr.bf16.gmra.mxu0 %v516
        %v736 = vpop.f32.mrf.mxu0
        %v737 = vadd.f32 %v650, %v736
        %v738 = vpop.f32.mrf.mxu0
        %v739 = vpop.f32.mrf.mxu0
        %v740 = vadd.f32 %v651, %v739
        %v741 = vpop.f32.mrf.mxu0
        %742 = vmatprep.mubr.bf16.mxu0 0
        %743 = vmatmul.mubr.bf16.gmra.mxu0 %v517
        %v744 = vpop.f32.mrf.mxu0
        %v745 = vadd.f32 %v652, %v744
        %v746 = vpop.f32.mrf.mxu0
        %v747 = vpop.f32.mrf.mxu0
        %v748 = vadd.f32 %v653, %v747
        %v749 = vpop.f32.mrf.mxu0
        %750 = vdwg.mxu0
        %751 = vmatprep.subr.bf16.mxu0 0
        %752 = vmatpush1.bf16.xpose.msra.mxu0 %v621
        %753 = vmatprep.subr.bf16.mxu0 0
        %754 = vmatpush1.bf16.xpose.msra.mxu0 %v620
        %755 = vmatprep.subr.bf16.mxu0 0
        %756 = vmatpush1.bf16.xpose.msra.mxu0 %v619
        %757 = vmatprep.subr.bf16.mxu0 0
        %758 = vmatpush1.bf16.xpose.msra.mxu0 %v618
        %759 = vmatprep.subr.bf16.mxu0 0
        %760 = vmatpush1.bf16.xpose.msra.mxu0 %v617
        %761 = vmatprep.subr.bf16.mxu0 0
        %762 = vmatpush1.bf16.xpose.msra.mxu0 %v616
        %763 = vmatprep.subr.bf16.mxu0 0
        %764 = vmatpush1.bf16.xpose.msra.mxu0 %v615
        %765 = vmatprep.subr.bf16.mxu0 0
        %766 = vmatpush1.bf16.xpose.msra.mxu0 %v614
        %767 = vmatprep.subr.bf16.mxu0 0
        %768 = vmatpush2.bf16.xpose.msra.mxu0 0
        %769 = vmatprep.subr.bf16.mxu0 0
        %770 = vmatpush2.bf16.xpose.msra.mxu0 0
        %771 = vmatprep.subr.bf16.mxu0 0
        %772 = vmatpush2.bf16.xpose.msra.mxu0 0
        %773 = vmatprep.subr.bf16.mxu0 0
        %774 = vmatpush2.bf16.xpose.msra.mxu0 0
        %775 = vmatprep.subr.bf16.mxu0 0
        %776 = vmatpush2.bf16.xpose.msra.mxu0 0
        %777 = vmatprep.subr.bf16.mxu0 0
        %778 = vmatpush2.bf16.xpose.msra.mxu0 0
        %779 = vmatprep.subr.bf16.mxu0 0
        %780 = vmatpush2.bf16.xpose.msra.mxu0 0
        %781 = vmatprep.subr.bf16.mxu0 0
        %782 = vmatpush2.bf16.xpose.msra.mxu0 0
        %783 = vmatprep.mubr.bf16.mxu0 0
        %784 = vmatmul.mubr.bf16.gmra.mxu0 %v518
        %v785 = vpop.f32.mrf.mxu0
        %v786 = vadd.f32 %v638, %v785
        %v787 = vpop.f32.mrf.mxu0
        %v788 = vpop.f32.mrf.mxu0
        %v789 = vadd.f32 %v639, %v788
        %v790 = vpop.f32.mrf.mxu0
        %791 = vmatprep.mubr.bf16.mxu0 0
        %792 = vmatmul.mubr.bf16.gmra.mxu0 %v519
        %v793 = vpop.f32.mrf.mxu0
        %v794 = vadd.f32 %v640, %v793
        %v795 = vpop.f32.mrf.mxu0
        %v796 = vpop.f32.mrf.mxu0
        %v797 = vadd.f32 %v641, %v796
        %v798 = vpop.f32.mrf.mxu0
        %799 = vmatprep.mubr.bf16.mxu0 0
        %800 = vmatmul.mubr.bf16.gmra.mxu0 %v520
        %v801 = vpop.f32.mrf.mxu0
        %v802 = vadd.f32 %v642, %v801
        %v803 = vpop.f32.mrf.mxu0
        %v804 = vpop.f32.mrf.mxu0
        %v805 = vadd.f32 %v643, %v804
        %v806 = vpop.f32.mrf.mxu0
        %807 = vmatprep.mubr.bf16.mxu0 0
        %808 = vmatmul.mubr.bf16.gmra.mxu0 %v521
        %v809 = vpop.f32.mrf.mxu0
        %v810 = vadd.f32 %v644, %v809
        %v811 = vpop.f32.mrf.mxu0
        %v812 = vpop.f32.mrf.mxu0
        %v813 = vadd.f32 %v645, %v812
        %v814 = vpop.f32.mrf.mxu0
        %815 = vmatprep.mubr.bf16.mxu0 0
        %816 = vmatmul.mubr.bf16.gmra.mxu0 %v522
        %v817 = vpop.f32.mrf.mxu0
        %v818 = vadd.f32 %v646, %v817
        %v819 = vpop.f32.mrf.mxu0
        %v820 = vpop.f32.mrf.mxu0
        %v821 = vadd.f32 %v647, %v820
        %v822 = vpop.f32.mrf.mxu0
        %823 = vmatprep.mubr.bf16.mxu0 0
        %824 = vmatmul.mubr.bf16.gmra.mxu0 %v523
        %v825 = vpop.f32.mrf.mxu0
        %v826 = vadd.f32 %v648, %v825
        %v827 = vpop.f32.mrf.mxu0
        %v828 = vpop.f32.mrf.mxu0
        %v829 = vadd.f32 %v649, %v828
        %v830 = vpop.f32.mrf.mxu0
        %831 = vmatprep.mubr.bf16.mxu0 0
        %832 = vmatmul.mubr.bf16.gmra.mxu0 %v524
        %v833 = vpop.f32.mrf.mxu0
        %v834 = vadd.f32 %v650, %v833
        %v835 = vpop.f32.mrf.mxu0
        %v836 = vpop.f32.mrf.mxu0
        %v837 = vadd.f32 %v651, %v836
        %v838 = vpop.f32.mrf.mxu0
        %839 = vmatprep.mubr.bf16.mxu0 0
        %840 = vmatmul.mubr.bf16.gmra.mxu0 %v525
        %v841 = vpop.f32.mrf.mxu0
        %v842 = vadd.f32 %v652, %v841
        %v843 = vpop.f32.mrf.mxu0
        %v844 = vpop.f32.mrf.mxu0
        %v845 = vadd.f32 %v653, %v844
        %v846 = vpop.f32.mrf.mxu0
        %847 = vdwg.mxu0
        %848 = vmatprep.subr.bf16.mxu0 0
        %849 = vmatpush1.bf16.xpose.msra.mxu0 %v629
        %850 = vmatprep.subr.bf16.mxu0 0
        %851 = vmatpush1.bf16.xpose.msra.mxu0 %v628
        %852 = vmatprep.subr.bf16.mxu0 0
        %853 = vmatpush1.bf16.xpose.msra.mxu0 %v627
        %854 = vmatprep.subr.bf16.mxu0 0
        %855 = vmatpush1.bf16.xpose.msra.mxu0 %v626
        %856 = vmatprep.subr.bf16.mxu0 0
        %857 = vmatpush1.bf16.xpose.msra.mxu0 %v625
        %858 = vmatprep.subr.bf16.mxu0 0
        %859 = vmatpush1.bf16.xpose.msra.mxu0 %v624
        %860 = vmatprep.subr.bf16.mxu0 0
        %861 = vmatpush1.bf16.xpose.msra.mxu0 %v623
        %862 = vmatprep.subr.bf16.mxu0 0
        %863 = vmatpush1.bf16.xpose.msra.mxu0 %v622
        %864 = vmatprep.subr.bf16.mxu0 0
        %865 = vmatpush2.bf16.xpose.msra.mxu0 0
        %866 = vmatprep.subr.bf16.mxu0 0
        %867 = vmatpush2.bf16.xpose.msra.mxu0 0
        %868 = vmatprep.subr.bf16.mxu0 0
        %869 = vmatpush2.bf16.xpose.msra.mxu0 0
        %870 = vmatprep.subr.bf16.mxu0 0
        %871 = vmatpush2.bf16.xpose.msra.mxu0 0
        %872 = vmatprep.subr.bf16.mxu0 0
        %873 = vmatpush2.bf16.xpose.msra.mxu0 0
        %874 = vmatprep.subr.bf16.mxu0 0
        %875 = vmatpush2.bf16.xpose.msra.mxu0 0
        %876 = vmatprep.subr.bf16.mxu0 0
        %877 = vmatpush2.bf16.xpose.msra.mxu0 0
        %878 = vmatprep.subr.bf16.mxu0 0
        %879 = vmatpush2.bf16.xpose.msra.mxu0 0
        %880 = vmatprep.mubr.bf16.mxu0 0
        %881 = vmatmul.mubr.bf16.gmra.mxu0 %v526
        %v882 = vpop.f32.mrf.mxu0
        %v883 = vadd.f32 %v638, %v882
        %v884 = vpop.f32.mrf.mxu0
        %v885 = vpop.f32.mrf.mxu0
        %v886 = vadd.f32 %v639, %v885
        %v887 = vpop.f32.mrf.mxu0
        %888 = vmatprep.mubr.bf16.mxu0 0
        %889 = vmatmul.mubr.bf16.gmra.mxu0 %v527
        %v890 = vpop.f32.mrf.mxu0
        %v891 = vadd.f32 %v640, %v890
        %v892 = vpop.f32.mrf.mxu0
        %v893 = vpop.f32.mrf.mxu0
        %v894 = vadd.f32 %v641, %v893
        %v895 = vpop.f32.mrf.mxu0
        %896 = vmatprep.mubr.bf16.mxu0 0
        %897 = vmatmul.mubr.bf16.gmra.mxu0 %v528
        %v898 = vpop.f32.mrf.mxu0
        %v899 = vadd.f32 %v642, %v898
        %v900 = vpop.f32.mrf.mxu0
        %v901 = vpop.f32.mrf.mxu0
        %v902 = vadd.f32 %v643, %v901
        %v903 = vpop.f32.mrf.mxu0
        %904 = vmatprep.mubr.bf16.mxu0 0
        %905 = vmatmul.mubr.bf16.gmra.mxu0 %v529
        %v906 = vpop.f32.mrf.mxu0
        %v907 = vadd.f32 %v644, %v906
        %v908 = vpop.f32.mrf.mxu0
        %v909 = vpop.f32.mrf.mxu0
        %v910 = vadd.f32 %v645, %v909
        %v911 = vpop.f32.mrf.mxu0
        %912 = vmatprep.mubr.bf16.mxu0 0
        %913 = vmatmul.mubr.bf16.gmra.mxu0 %v530
        %v914 = vpop.f32.mrf.mxu0
        %v915 = vadd.f32 %v646, %v914
        %v916 = vpop.f32.mrf.mxu0
        %v917 = vpop.f32.mrf.mxu0
        %v918 = vadd.f32 %v647, %v917
        %v919 = vpop.f32.mrf.mxu0
        %920 = vmatprep.mubr.bf16.mxu0 0
        %921 = vmatmul.mubr.bf16.gmra.mxu0 %v531
        %v922 = vpop.f32.mrf.mxu0
        %v923 = vadd.f32 %v648, %v922
        %v924 = vpop.f32.mrf.mxu0
        %v925 = vpop.f32.mrf.mxu0
        %v926 = vadd.f32 %v649, %v925
        %v927 = vpop.f32.mrf.mxu0
        %928 = vmatprep.mubr.bf16.mxu0 0
        %929 = vmatmul.mubr.bf16.gmra.mxu0 %v532
        %v930 = vpop.f32.mrf.mxu0
        %v931 = vadd.f32 %v650, %v930
        %v932 = vpop.f32.mrf.mxu0
        %v933 = vpop.f32.mrf.mxu0
        %v934 = vadd.f32 %v651, %v933
        %v935 = vpop.f32.mrf.mxu0
        %936 = vmatprep.mubr.bf16.mxu0 0
        %937 = vmatmul.mubr.bf16.gmra.mxu0 %v533
        %v938 = vpop.f32.mrf.mxu0
        %v939 = vadd.f32 %v652, %v938
        %v940 = vpop.f32.mrf.mxu0
        %v941 = vpop.f32.mrf.mxu0
        %v942 = vadd.f32 %v653, %v941
        %v943 = vpop.f32.mrf.mxu0
        %944 = vdwg.mxu0
        %945 = vmatprep.subr.bf16.mxu0 0
        %946 = vmatpush1.bf16.xpose.msra.mxu0 %v637
        %947 = vmatprep.subr.bf16.mxu0 0
        %948 = vmatpush1.bf16.xpose.msra.mxu0 %v636
        %949 = vmatprep.subr.bf16.mxu0 0
        %950 = vmatpush1.bf16.xpose.msra.mxu0 %v635
        %951 = vmatprep.subr.bf16.mxu0 0
        %952 = vmatpush1.bf16.xpose.msra.mxu0 %v634
        %953 = vmatprep.subr.bf16.mxu0 0
        %954 = vmatpush1.bf16.xpose.msra.mxu0 %v633
        %955 = vmatprep.subr.bf16.mxu0 0
        %956 = vmatpush1.bf16.xpose.msra.mxu0 %v632
        %957 = vmatprep.subr.bf16.mxu0 0
        %958 = vmatpush1.bf16.xpose.msra.mxu0 %v631
        %959 = vmatprep.subr.bf16.mxu0 0
        %960 = vmatpush1.bf16.xpose.msra.mxu0 %v630
        %961 = vmatprep.subr.bf16.mxu0 0
        %962 = vmatpush2.bf16.xpose.msra.mxu0 0
        %963 = vmatprep.subr.bf16.mxu0 0
        %964 = vmatpush2.bf16.xpose.msra.mxu0 0
        %965 = vmatprep.subr.bf16.mxu0 0
        %966 = vmatpush2.bf16.xpose.msra.mxu0 0
        %967 = vmatprep.subr.bf16.mxu0 0
        %968 = vmatpush2.bf16.xpose.msra.mxu0 0
        %969 = vmatprep.subr.bf16.mxu0 0
        %970 = vmatpush2.bf16.xpose.msra.mxu0 0
        %971 = vmatprep.subr.bf16.mxu0 0
        %972 = vmatpush2.bf16.xpose.msra.mxu0 0
        %973 = vmatprep.subr.bf16.mxu0 0
        %974 = vmatpush2.bf16.xpose.msra.mxu0 0
        %975 = vmatprep.subr.bf16.mxu0 0
        %976 = vmatpush2.bf16.xpose.msra.mxu0 0
        %977 = vmatprep.mubr.bf16.mxu0 0
        %978 = vmatmul.mubr.bf16.gmra.mxu0 %v534
        %v979 = vpop.f32.mrf.mxu0
        %v980 = vadd.f32 %v638, %v979
        %v981 = vpop.f32.mrf.mxu0
        %v982 = vpop.f32.mrf.mxu0
        %v983 = vadd.f32 %v639, %v982
        %v984 = vpop.f32.mrf.mxu0
        %985 = vmatprep.mubr.bf16.mxu0 0
        %986 = vmatmul.mubr.bf16.gmra.mxu0 %v535
        %v987 = vpop.f32.mrf.mxu0
        %v988 = vadd.f32 %v640, %v987
        %v989 = vpop.f32.mrf.mxu0
        %v990 = vpop.f32.mrf.mxu0
        %v991 = vadd.f32 %v641, %v990
        %v992 = vpop.f32.mrf.mxu0
        %993 = vmatprep.mubr.bf16.mxu0 0
        %994 = vmatmul.mubr.bf16.gmra.mxu0 %v536
        %v995 = vpop.f32.mrf.mxu0
        %v996 = vadd.f32 %v642, %v995
        %v997 = vpop.f32.mrf.mxu0
        %v998 = vpop.f32.mrf.mxu0
        %v999 = vadd.f32 %v643, %v998
        %v1000 = vpop.f32.mrf.mxu0
        %1001 = vmatprep.mubr.bf16.mxu0 0
        %1002 = vmatmul.mubr.bf16.gmra.mxu0 %v537
        %v1003 = vpop.f32.mrf.mxu0
        %v1004 = vadd.f32 %v644, %v1003
        %v1005 = vpop.f32.mrf.mxu0
        %v1006 = vpop.f32.mrf.mxu0
        %v1007 = vadd.f32 %v645, %v1006
        %v1008 = vpop.f32.mrf.mxu0
        %1009 = vmatprep.mubr.bf16.mxu0 0
        %1010 = vmatmul.mubr.bf16.gmra.mxu0 %v538
        %v1011 = vpop.f32.mrf.mxu0
        %v1012 = vadd.f32 %v646, %v1011
        %v1013 = vpop.f32.mrf.mxu0
        %v1014 = vpop.f32.mrf.mxu0
        %v1015 = vadd.f32 %v647, %v1014
        %v1016 = vpop.f32.mrf.mxu0
        %1017 = vmatprep.mubr.bf16.mxu0 0
        %1018 = vmatmul.mubr.bf16.gmra.mxu0 %v539
        %v1019 = vpop.f32.mrf.mxu0
        %v1020 = vadd.f32 %v648, %v1019
        %v1021 = vpop.f32.mrf.mxu0
        %v1022 = vpop.f32.mrf.mxu0
        %v1023 = vadd.f32 %v649, %v1022
        %v1024 = vpop.f32.mrf.mxu0
        %1025 = vmatprep.mubr.bf16.mxu0 0
        %1026 = vmatmul.mubr.bf16.gmra.mxu0 %v540
        %v1027 = vpop.f32.mrf.mxu0
        %v1028 = vadd.f32 %v650, %v1027
        %v1029 = vpop.f32.mrf.mxu0
        %v1030 = vpop.f32.mrf.mxu0
        %v1031 = vadd.f32 %v651, %v1030
        %v1032 = vpop.f32.mrf.mxu0
        %1033 = vmatprep.mubr.bf16.mxu0 0
        %1034 = vmatmul.mubr.bf16.gmra.mxu0 %v541
        %v1035 = vpop.f32.mrf.mxu0
        %v1036 = vadd.f32 %v652, %v1035
        %v1037 = vpop.f32.mrf.mxu0
        %v1038 = vpop.f32.mrf.mxu0
        %v1039 = vadd.f32 %v653, %v1038
        %v1040 = vpop.f32.mrf.mxu0
        %1041 = vdwg.mxu0
        %1042 = vmax.xlane.f32.xlu0 %v689
        %v1043 = vpop.xlane.xlu0 %1042
        %1044 = vmax.xlane.f32.xlu0 %v692
        %v1045 = vpop.xlane.xlu0 %1044
        %1046 = vmax.xlane.f32.xlu0 %v697
        %v1047 = vpop.xlane.xlu0 %1046
        %1048 = vmax.xlane.f32.xlu0 %v700
        %v1049 = vpop.xlane.xlu0 %1048
        %1050 = vmax.xlane.f32.xlu0 %v705
        %v1051 = vpop.xlane.xlu0 %1050
        %1052 = vmax.xlane.f32.xlu0 %v708
        %v1053 = vpop.xlane.xlu0 %1052
        %1054 = vmax.xlane.f32.xlu0 %v713
        %v1055 = vpop.xlane.xlu0 %1054
        %1056 = vmax.xlane.f32.xlu0 %v716
        %v1057 = vpop.xlane.xlu0 %1056
        %1058 = vmax.xlane.f32.xlu0 %v721
        %v1059 = vpop.xlane.xlu0 %1058
        %1060 = vmax.xlane.f32.xlu0 %v724
        %v1061 = vpop.xlane.xlu0 %1060
        %1062 = vmax.xlane.f32.xlu0 %v729
        %v1063 = vpop.xlane.xlu0 %1062
        %1064 = vmax.xlane.f32.xlu0 %v732
        %v1065 = vpop.xlane.xlu0 %1064
        %1066 = vmax.xlane.f32.xlu0 %v737
        %v1067 = vpop.xlane.xlu0 %1066
        %1068 = vmax.xlane.f32.xlu0 %v740
        %v1069 = vpop.xlane.xlu0 %1068
        %1070 = vmax.xlane.f32.xlu0 %v745
        %v1071 = vpop.xlane.xlu0 %1070
        %1072 = vmax.xlane.f32.xlu0 %v748
        %v1073 = vpop.xlane.xlu0 %1072
        %1074 = vmax.xlane.f32.xlu0 %v786
        %v1075 = vpop.xlane.xlu0 %1074
        %1076 = vmax.xlane.f32.xlu0 %v789
        %v1077 = vpop.xlane.xlu0 %1076
        %1078 = vmax.xlane.f32.xlu0 %v794
        %v1079 = vpop.xlane.xlu0 %1078
        %1080 = vmax.xlane.f32.xlu0 %v797
        %v1081 = vpop.xlane.xlu0 %1080
        %1082 = vmax.xlane.f32.xlu0 %v802
        %v1083 = vpop.xlane.xlu0 %1082
        %1084 = vmax.xlane.f32.xlu0 %v805
        %v1085 = vpop.xlane.xlu0 %1084
        %1086 = vmax.xlane.f32.xlu0 %v810
        %v1087 = vpop.xlane.xlu0 %1086
        %1088 = vmax.xlane.f32.xlu0 %v813
        %v1089 = vpop.xlane.xlu0 %1088
        %1090 = vmax.xlane.f32.xlu0 %v818
        %v1091 = vpop.xlane.xlu0 %1090
        %1092 = vmax.xlane.f32.xlu0 %v821
        %v1093 = vpop.xlane.xlu0 %1092
        %1094 = vmax.xlane.f32.xlu0 %v826
        %v1095 = vpop.xlane.xlu0 %1094
        %1096 = vmax.xlane.f32.xlu0 %v829
        %v1097 = vpop.xlane.xlu0 %1096
        %1098 = vmax.xlane.f32.xlu0 %v834
        %v1099 = vpop.xlane.xlu0 %1098
        %1100 = vmax.xlane.f32.xlu0 %v837
        %v1101 = vpop.xlane.xlu0 %1100
        %1102 = vmax.xlane.f32.xlu0 %v842
        %v1103 = vpop.xlane.xlu0 %1102
        %1104 = vmax.xlane.f32.xlu0 %v845
        %v1105 = vpop.xlane.xlu0 %1104
        %1106 = vmax.xlane.f32.xlu0 %v883
        %v1107 = vpop.xlane.xlu0 %1106
        %1108 = vmax.xlane.f32.xlu0 %v886
        %v1109 = vpop.xlane.xlu0 %1108
        %1110 = vmax.xlane.f32.xlu0 %v891
        %v1111 = vpop.xlane.xlu0 %1110
        %1112 = vmax.xlane.f32.xlu0 %v894
        %v1113 = vpop.xlane.xlu0 %1112
        %1114 = vmax.xlane.f32.xlu0 %v899
        %v1115 = vpop.xlane.xlu0 %1114
        %1116 = vmax.xlane.f32.xlu0 %v902
        %v1117 = vpop.xlane.xlu0 %1116
        %1118 = vmax.xlane.f32.xlu0 %v907
        %v1119 = vpop.xlane.xlu0 %1118
        %1120 = vmax.xlane.f32.xlu0 %v910
        %v1121 = vpop.xlane.xlu0 %1120
        %1122 = vmax.xlane.f32.xlu0 %v915
        %v1123 = vpop.xlane.xlu0 %1122
        %1124 = vmax.xlane.f32.xlu0 %v918
        %v1125 = vpop.xlane.xlu0 %1124
        %1126 = vmax.xlane.f32.xlu0 %v923
        %v1127 = vpop.xlane.xlu0 %1126
        %1128 = vmax.xlane.f32.xlu0 %v926
        %v1129 = vpop.xlane.xlu0 %1128
        %1130 = vmax.xlane.f32.xlu0 %v931
        %v1131 = vpop.xlane.xlu0 %1130
        %1132 = vmax.xlane.f32.xlu0 %v934
        %v1133 = vpop.xlane.xlu0 %1132
        %1134 = vmax.xlane.f32.xlu0 %v939
        %v1135 = vpop.xlane.xlu0 %1134
        %1136 = vmax.xlane.f32.xlu0 %v942
        %v1137 = vpop.xlane.xlu0 %1136
        %1138 = vmax.xlane.f32.xlu0 %v980
        %v1139 = vpop.xlane.xlu0 %1138
        %1140 = vmax.xlane.f32.xlu0 %v983
        %v1141 = vpop.xlane.xlu0 %1140
        %1142 = vmax.xlane.f32.xlu0 %v988
        %v1143 = vpop.xlane.xlu0 %1142
        %1144 = vmax.xlane.f32.xlu0 %v991
        %v1145 = vpop.xlane.xlu0 %1144
        %1146 = vmax.xlane.f32.xlu0 %v996
        %v1147 = vpop.xlane.xlu0 %1146
        %1148 = vmax.xlane.f32.xlu0 %v999
        %v1149 = vpop.xlane.xlu0 %1148
        %1150 = vmax.xlane.f32.xlu0 %v1004
        %v1151 = vpop.xlane.xlu0 %1150
        %1152 = vmax.xlane.f32.xlu0 %v1007
        %v1153 = vpop.xlane.xlu0 %1152
        %1154 = vmax.xlane.f32.xlu0 %v1012
        %v1155 = vpop.xlane.xlu0 %1154
        %1156 = vmax.xlane.f32.xlu0 %v1015
        %v1157 = vpop.xlane.xlu0 %1156
        %1158 = vmax.xlane.f32.xlu0 %v1020
        %v1159 = vpop.xlane.xlu0 %1158
        %1160 = vmax.xlane.f32.xlu0 %v1023
        %v1161 = vpop.xlane.xlu0 %1160
        %1162 = vmax.xlane.f32.xlu0 %v1028
        %v1163 = vpop.xlane.xlu0 %1162
        %1164 = vmax.xlane.f32.xlu0 %v1031
        %v1165 = vpop.xlane.xlu0 %1164
        %1166 = vmax.xlane.f32.xlu0 %v1036
        %v1167 = vpop.xlane.xlu0 %1166
        %1168 = vmax.xlane.f32.xlu0 %v1039
        %v1169 = vpop.xlane.xlu0 %1168
        %v1170 = vsub.f32 %v689, %v1043
        %v1171 = vsub.f32 %v692, %v1045
        %v1172 = vsub.f32 %v697, %v1047
        %v1173 = vsub.f32 %v700, %v1049
        %v1174 = vsub.f32 %v705, %v1051
        %v1175 = vsub.f32 %v708, %v1053
        %v1176 = vsub.f32 %v713, %v1055
        %v1177 = vsub.f32 %v716, %v1057
        %v1178 = vsub.f32 %v721, %v1059
        %v1179 = vsub.f32 %v724, %v1061
        %v1180 = vsub.f32 %v729, %v1063
        %v1181 = vsub.f32 %v732, %v1065
        %v1182 = vsub.f32 %v737, %v1067
        %v1183 = vsub.f32 %v740, %v1069
        %v1184 = vsub.f32 %v745, %v1071
        %v1185 = vsub.f32 %v748, %v1073
        %v1186 = vsub.f32 %v786, %v1075
        %v1187 = vsub.f32 %v789, %v1077
        %v1188 = vsub.f32 %v794, %v1079
        %v1189 = vsub.f32 %v797, %v1081
        %v1190 = vsub.f32 %v802, %v1083
        %v1191 = vsub.f32 %v805, %v1085
        %v1192 = vsub.f32 %v810, %v1087
        %v1193 = vsub.f32 %v813, %v1089
        %v1194 = vsub.f32 %v818, %v1091
        %v1195 = vsub.f32 %v821, %v1093
        %v1196 = vsub.f32 %v826, %v1095
        %v1197 = vsub.f32 %v829, %v1097
        %v1198 = vsub.f32 %v834, %v1099
        %v1199 = vsub.f32 %v837, %v1101
        %v1200 = vsub.f32 %v842, %v1103
        %v1201 = vsub.f32 %v845, %v1105
        %v1202 = vsub.f32 %v883, %v1107
        %v1203 = vsub.f32 %v886, %v1109
        %v1204 = vsub.f32 %v891, %v1111
        %v1205 = vsub.f32 %v894, %v1113
        %v1206 = vsub.f32 %v899, %v1115
        %v1207 = vsub.f32 %v902, %v1117
        %v1208 = vsub.f32 %v907, %v1119
        %v1209 = vsub.f32 %v910, %v1121
        %v1210 = vsub.f32 %v915, %v1123
        %v1211 = vsub.f32 %v918, %v1125
        %v1212 = vsub.f32 %v923, %v1127
        %v1213 = vsub.f32 %v926, %v1129
        %v1214 = vsub.f32 %v931, %v1131
        %v1215 = vsub.f32 %v934, %v1133
        %v1216 = vsub.f32 %v939, %v1135
        %v1217 = vsub.f32 %v942, %v1137
        %v1218 = vsub.f32 %v980, %v1139
        %v1219 = vsub.f32 %v983, %v1141
        %v1220 = vsub.f32 %v988, %v1143
        %v1221 = vsub.f32 %v991, %v1145
        %v1222 = vsub.f32 %v996, %v1147
        %v1223 = vsub.f32 %v999, %v1149
        %v1224 = vsub.f32 %v1004, %v1151
        %v1225 = vsub.f32 %v1007, %v1153
        %v1226 = vsub.f32 %v1012, %v1155
        %v1227 = vsub.f32 %v1015, %v1157
        %v1228 = vsub.f32 %v1020, %v1159
        %v1229 = vsub.f32 %v1023, %v1161
        %v1230 = vsub.f32 %v1028, %v1163
        %v1231 = vsub.f32 %v1031, %v1165
        %v1232 = vsub.f32 %v1036, %v1167
        %v1233 = vsub.f32 %v1039, %v1169
        %v1234 = vmul.f32 %v1170, 1.442695
        %v1235 = vpow.pop %v1234
        %v1236 = vmul.f32 %v1171, 1.442695
        %v1237 = vpow.pop %v1236
        %v1238 = vmul.f32 %v1172, 1.442695
        %v1239 = vpow.pop %v1238
        %v1240 = vmul.f32 %v1173, 1.442695
        %v1241 = vpow.pop %v1240
        %v1242 = vmul.f32 %v1174, 1.442695
        %v1243 = vpow.pop %v1242
        %v1244 = vmul.f32 %v1175, 1.442695
        %v1245 = vpow.pop %v1244
        %v1246 = vmul.f32 %v1176, 1.442695
        %v1247 = vpow.pop %v1246
        %v1248 = vmul.f32 %v1177, 1.442695
        %v1249 = vpow.pop %v1248
        %v1250 = vmul.f32 %v1178, 1.442695
        %v1251 = vpow.pop %v1250
        %v1252 = vmul.f32 %v1179, 1.442695
        %v1253 = vpow.pop %v1252
        %v1254 = vmul.f32 %v1180, 1.442695
        %v1255 = vpow.pop %v1254
        %v1256 = vmul.f32 %v1181, 1.442695
        %v1257 = vpow.pop %v1256
        %v1258 = vmul.f32 %v1182, 1.442695
        %v1259 = vpow.pop %v1258
        %v1260 = vmul.f32 %v1183, 1.442695
        %v1261 = vpow.pop %v1260
        %v1262 = vmul.f32 %v1184, 1.442695
        %v1263 = vpow.pop %v1262
        %v1264 = vmul.f32 %v1185, 1.442695
        %v1265 = vpow.pop %v1264
        %v1266 = vmul.f32 %v1186, 1.442695
        %v1267 = vpow.pop %v1266
        %v1268 = vmul.f32 %v1187, 1.442695
        %v1269 = vpow.pop %v1268
        %v1270 = vmul.f32 %v1188, 1.442695
        %v1271 = vpow.pop %v1270
        %v1272 = vmul.f32 %v1189, 1.442695
        %v1273 = vpow.pop %v1272
        %v1274 = vmul.f32 %v1190, 1.442695
        %v1275 = vpow.pop %v1274
        %v1276 = vmul.f32 %v1191, 1.442695
        %v1277 = vpow.pop %v1276
        %v1278 = vmul.f32 %v1192, 1.442695
        %v1279 = vpow.pop %v1278
        %v1280 = vmul.f32 %v1193, 1.442695
        %v1281 = vpow.pop %v1280
        %v1282 = vmul.f32 %v1194, 1.442695
        %v1283 = vpow.pop %v1282
        %v1284 = vmul.f32 %v1195, 1.442695
        %v1285 = vpow.pop %v1284
        %v1286 = vmul.f32 %v1196, 1.442695
        %v1287 = vpow.pop %v1286
        %v1288 = vmul.f32 %v1197, 1.442695
        %v1289 = vpow.pop %v1288
        %v1290 = vmul.f32 %v1198, 1.442695
        %v1291 = vpow.pop %v1290
        %v1292 = vmul.f32 %v1199, 1.442695
        %v1293 = vpow.pop %v1292
        %v1294 = vmul.f32 %v1200, 1.442695
        %v1295 = vpow.pop %v1294
        %v1296 = vmul.f32 %v1201, 1.442695
        %v1297 = vpow.pop %v1296
        %v1298 = vmul.f32 %v1202, 1.442695
        %v1299 = vpow.pop %v1298
        %v1300 = vmul.f32 %v1203, 1.442695
        %v1301 = vpow.pop %v1300
        %v1302 = vmul.f32 %v1204, 1.442695
        %v1303 = vpow.pop %v1302
        %v1304 = vmul.f32 %v1205, 1.442695
        %v1305 = vpow.pop %v1304
        %v1306 = vmul.f32 %v1206, 1.442695
        %v1307 = vpow.pop %v1306
        %v1308 = vmul.f32 %v1207, 1.442695
        %v1309 = vpow.pop %v1308
        %v1310 = vmul.f32 %v1208, 1.442695
        %v1311 = vpow.pop %v1310
        %v1312 = vmul.f32 %v1209, 1.442695
        %v1313 = vpow.pop %v1312
        %v1314 = vmul.f32 %v1210, 1.442695
        %v1315 = vpow.pop %v1314
        %v1316 = vmul.f32 %v1211, 1.442695
        %v1317 = vpow.pop %v1316
        %v1318 = vmul.f32 %v1212, 1.442695
        %v1319 = vpow.pop %v1318
        %v1320 = vmul.f32 %v1213, 1.442695
        %v1321 = vpow.pop %v1320
        %v1322 = vmul.f32 %v1214, 1.442695
        %v1323 = vpow.pop %v1322
        %v1324 = vmul.f32 %v1215, 1.442695
        %v1325 = vpow.pop %v1324
        %v1326 = vmul.f32 %v1216, 1.442695
        %v1327 = vpow.pop %v1326
        %v1328 = vmul.f32 %v1217, 1.442695
        %v1329 = vpow.pop %v1328
        %v1330 = vmul.f32 %v1218, 1.442695
        %v1331 = vpow.pop %v1330
        %v1332 = vmul.f32 %v1219, 1.442695
        %v1333 = vpow.pop %v1332
        %v1334 = vmul.f32 %v1220, 1.442695
        %v1335 = vpow.pop %v1334
        %v1336 = vmul.f32 %v1221, 1.442695
        %v1337 = vpow.pop %v1336
        %v1338 = vmul.f32 %v1222, 1.442695
        %v1339 = vpow.pop %v1338
        %v1340 = vmul.f32 %v1223, 1.442695
        %v1341 = vpow.pop %v1340
        %v1342 = vmul.f32 %v1224, 1.442695
        %v1343 = vpow.pop %v1342
        %v1344 = vmul.f32 %v1225, 1.442695
        %v1345 = vpow.pop %v1344
        %v1346 = vmul.f32 %v1226, 1.442695
        %v1347 = vpow.pop %v1346
        %v1348 = vmul.f32 %v1227, 1.442695
        %v1349 = vpow.pop %v1348
        %v1350 = vmul.f32 %v1228, 1.442695
        %v1351 = vpow.pop %v1350
        %v1352 = vmul.f32 %v1229, 1.442695
        %v1353 = vpow.pop %v1352
        %v1354 = vmul.f32 %v1230, 1.442695
        %v1355 = vpow.pop %v1354
        %v1356 = vmul.f32 %v1231, 1.442695
        %v1357 = vpow.pop %v1356
        %v1358 = vmul.f32 %v1232, 1.442695
        %v1359 = vpow.pop %v1358
        %v1360 = vmul.f32 %v1233, 1.442695
        %v1361 = vpow.pop %v1360
        %1362 = vadd.xlane.f32.xlu0 %v1235
        %v1363 = vpop.xlane.xlu0 %1362
        %1364 = vadd.xlane.f32.xlu0 %v1237
        %v1365 = vpop.xlane.xlu0 %1364
        %1366 = vadd.xlane.f32.xlu0 %v1239
        %v1367 = vpop.xlane.xlu0 %1366
        %1368 = vadd.xlane.f32.xlu0 %v1241
        %v1369 = vpop.xlane.xlu0 %1368
        %1370 = vadd.xlane.f32.xlu0 %v1243
        %v1371 = vpop.xlane.xlu0 %1370
        %1372 = vadd.xlane.f32.xlu0 %v1245
        %v1373 = vpop.xlane.xlu0 %1372
        %1374 = vadd.xlane.f32.xlu0 %v1247
        %v1375 = vpop.xlane.xlu0 %1374
        %1376 = vadd.xlane.f32.xlu0 %v1249
        %v1377 = vpop.xlane.xlu0 %1376
        %1378 = vadd.xlane.f32.xlu0 %v1251
        %v1379 = vpop.xlane.xlu0 %1378
        %1380 = vadd.xlane.f32.xlu0 %v1253
        %v1381 = vpop.xlane.xlu0 %1380
        %1382 = vadd.xlane.f32.xlu0 %v1255
        %v1383 = vpop.xlane.xlu0 %1382
        %1384 = vadd.xlane.f32.xlu0 %v1257
        %v1385 = vpop.xlane.xlu0 %1384
        %1386 = vadd.xlane.f32.xlu0 %v1259
        %v1387 = vpop.xlane.xlu0 %1386
        %1388 = vadd.xlane.f32.xlu0 %v1261
        %v1389 = vpop.xlane.xlu0 %1388
        %1390 = vadd.xlane.f32.xlu0 %v1263
        %v1391 = vpop.xlane.xlu0 %1390
        %1392 = vadd.xlane.f32.xlu0 %v1265
        %v1393 = vpop.xlane.xlu0 %1392
        %1394 = vadd.xlane.f32.xlu0 %v1267
        %v1395 = vpop.xlane.xlu0 %1394
        %1396 = vadd.xlane.f32.xlu0 %v1269
        %v1397 = vpop.xlane.xlu0 %1396
        %1398 = vadd.xlane.f32.xlu0 %v1271
        %v1399 = vpop.xlane.xlu0 %1398
        %1400 = vadd.xlane.f32.xlu0 %v1273
        %v1401 = vpop.xlane.xlu0 %1400
        %1402 = vadd.xlane.f32.xlu0 %v1275
        %v1403 = vpop.xlane.xlu0 %1402
        %1404 = vadd.xlane.f32.xlu0 %v1277
        %v1405 = vpop.xlane.xlu0 %1404
        %1406 = vadd.xlane.f32.xlu0 %v1279
        %v1407 = vpop.xlane.xlu0 %1406
        %1408 = vadd.xlane.f32.xlu0 %v1281
        %v1409 = vpop.xlane.xlu0 %1408
        %1410 = vadd.xlane.f32.xlu0 %v1283
        %v1411 = vpop.xlane.xlu0 %1410
        %1412 = vadd.xlane.f32.xlu0 %v1285
        %v1413 = vpop.xlane.xlu0 %1412
        %1414 = vadd.xlane.f32.xlu0 %v1287
        %v1415 = vpop.xlane.xlu0 %1414
        %1416 = vadd.xlane.f32.xlu0 %v1289
        %v1417 = vpop.xlane.xlu0 %1416
        %1418 = vadd.xlane.f32.xlu0 %v1291
        %v1419 = vpop.xlane.xlu0 %1418
        %1420 = vadd.xlane.f32.xlu0 %v1293
        %v1421 = vpop.xlane.xlu0 %1420
        %1422 = vadd.xlane.f32.xlu0 %v1295
        %v1423 = vpop.xlane.xlu0 %1422
        %1424 = vadd.xlane.f32.xlu0 %v1297
        %v1425 = vpop.xlane.xlu0 %1424
        %1426 = vadd.xlane.f32.xlu0 %v1299
        %v1427 = vpop.xlane.xlu0 %1426
        %1428 = vadd.xlane.f32.xlu0 %v1301
        %v1429 = vpop.xlane.xlu0 %1428
        %1430 = vadd.xlane.f32.xlu0 %v1303
        %v1431 = vpop.xlane.xlu0 %1430
        %1432 = vadd.xlane.f32.xlu0 %v1305
        %v1433 = vpop.xlane.xlu0 %1432
        %1434 = vadd.xlane.f32.xlu0 %v1307
        %v1435 = vpop.xlane.xlu0 %1434
        %1436 = vadd.xlane.f32.xlu0 %v1309
        %v1437 = vpop.xlane.xlu0 %1436
        %1438 = vadd.xlane.f32.xlu0 %v1311
        %v1439 = vpop.xlane.xlu0 %1438
        %1440 = vadd.xlane.f32.xlu0 %v1313
        %v1441 = vpop.xlane.xlu0 %1440
        %1442 = vadd.xlane.f32.xlu0 %v1315
        %v1443 = vpop.xlane.xlu0 %1442
        %1444 = vadd.xlane.f32.xlu0 %v1317
        %v1445 = vpop.xlane.xlu0 %1444
        %1446 = vadd.xlane.f32.xlu0 %v1319
        %v1447 = vpop.xlane.xlu0 %1446
        %1448 = vadd.xlane.f32.xlu0 %v1321
        %v1449 = vpop.xlane.xlu0 %1448
        %1450 = vadd.xlane.f32.xlu0 %v1323
        %v1451 = vpop.xlane.xlu0 %1450
        %1452 = vadd.xlane.f32.xlu0 %v1325
        %v1453 = vpop.xlane.xlu0 %1452
        %1454 = vadd.xlane.f32.xlu0 %v1327
        %v1455 = vpop.xlane.xlu0 %1454
        %1456 = vadd.xlane.f32.xlu0 %v1329
        %v1457 = vpop.xlane.xlu0 %1456
        %1458 = vadd.xlane.f32.xlu0 %v1331
        %v1459 = vpop.xlane.xlu0 %1458
        %1460 = vadd.xlane.f32.xlu0 %v1333
        %v1461 = vpop.xlane.xlu0 %1460
        %1462 = vadd.xlane.f32.xlu0 %v1335
        %v1463 = vpop.xlane.xlu0 %1462
        %1464 = vadd.xlane.f32.xlu0 %v1337
        %v1465 = vpop.xlane.xlu0 %1464
        %1466 = vadd.xlane.f32.xlu0 %v1339
        %v1467 = vpop.xlane.xlu0 %1466
        %1468 = vadd.xlane.f32.xlu0 %v1341
        %v1469 = vpop.xlane.xlu0 %1468
        %1470 = vadd.xlane.f32.xlu0 %v1343
        %v1471 = vpop.xlane.xlu0 %1470
        %1472 = vadd.xlane.f32.xlu0 %v1345
        %v1473 = vpop.xlane.xlu0 %1472
        %1474 = vadd.xlane.f32.xlu0 %v1347
        %v1475 = vpop.xlane.xlu0 %1474
        %1476 = vadd.xlane.f32.xlu0 %v1349
        %v1477 = vpop.xlane.xlu0 %1476
        %1478 = vadd.xlane.f32.xlu0 %v1351
        %v1479 = vpop.xlane.xlu0 %1478
        %1480 = vadd.xlane.f32.xlu0 %v1353
        %v1481 = vpop.xlane.xlu0 %1480
        %1482 = vadd.xlane.f32.xlu0 %v1355
        %v1483 = vpop.xlane.xlu0 %1482
        %1484 = vadd.xlane.f32.xlu0 %v1357
        %v1485 = vpop.xlane.xlu0 %1484
        %1486 = vadd.xlane.f32.xlu0 %v1359
        %v1487 = vpop.xlane.xlu0 %1486
        %1488 = vadd.xlane.f32.xlu0 %v1361
        %v1489 = vpop.xlane.xlu0 %1488
        %v1490 = vrcp.pop %v1363
        %v1491 = vrcp.pop %v1365
        %v1492 = vrcp.pop %v1367
        %v1493 = vrcp.pop %v1369
        %v1494 = vrcp.pop %v1371
        %v1495 = vrcp.pop %v1373
        %v1496 = vrcp.pop %v1375
        %v1497 = vrcp.pop %v1377
        %v1498 = vrcp.pop %v1379
        %v1499 = vrcp.pop %v1381
        %v1500 = vrcp.pop %v1383
        %v1501 = vrcp.pop %v1385
        %v1502 = vrcp.pop %v1387
        %v1503 = vrcp.pop %v1389
        %v1504 = vrcp.pop %v1391
        %v1505 = vrcp.pop %v1393
        %v1506 = vrcp.pop %v1395
        %v1507 = vrcp.pop %v1397
        %v1508 = vrcp.pop %v1399
        %v1509 = vrcp.pop %v1401
        %v1510 = vrcp.pop %v1403
        %v1511 = vrcp.pop %v1405
        %v1512 = vrcp.pop %v1407
        %v1513 = vrcp.pop %v1409
        %v1514 = vrcp.pop %v1411
        %v1515 = vrcp.pop %v1413
        %v1516 = vrcp.pop %v1415
        %v1517 = vrcp.pop %v1417
        %v1518 = vrcp.pop %v1419
        %v1519 = vrcp.pop %v1421
        %v1520 = vrcp.pop %v1423
        %v1521 = vrcp.pop %v1425
        %v1522 = vrcp.pop %v1427
        %v1523 = vrcp.pop %v1429
        %v1524 = vrcp.pop %v1431
        %v1525 = vrcp.pop %v1433
        %v1526 = vrcp.pop %v1435
        %v1527 = vrcp.pop %v1437
        %v1528 = vrcp.pop %v1439
        %v1529 = vrcp.pop %v1441
        %v1530 = vrcp.pop %v1443
        %v1531 = vrcp.pop %v1445
        %v1532 = vrcp.pop %v1447
        %v1533 = vrcp.pop %v1449
        %v1534 = vrcp.pop %v1451
        %v1535 = vrcp.pop %v1453
        %v1536 = vrcp.pop %v1455
        %v1537 = vrcp.pop %v1457
        %v1538 = vrcp.pop %v1459
        %v1539 = vrcp.pop %v1461
        %v1540 = vrcp.pop %v1463
        %v1541 = vrcp.pop %v1465
        %v1542 = vrcp.pop %v1467
        %v1543 = vrcp.pop %v1469
        %v1544 = vrcp.pop %v1471
        %v1545 = vrcp.pop %v1473
        %v1546 = vrcp.pop %v1475
        %v1547 = vrcp.pop %v1477
        %v1548 = vrcp.pop %v1479
        %v1549 = vrcp.pop %v1481
        %v1550 = vrcp.pop %v1483
        %v1551 = vrcp.pop %v1485
        %v1552 = vrcp.pop %v1487
        %v1553 = vrcp.pop %v1489
        %v1554 = vmul.f32 %v1490, 5.0
        %v1555 = vmul.f32 %v1491, 5.0
        %v1556 = vmul.f32 %v1492, 5.0
        %v1557 = vmul.f32 %v1493, 5.0
        %v1558 = vmul.f32 %v1494, 5.0
        %v1559 = vmul.f32 %v1495, 5.0
        %v1560 = vmul.f32 %v1496, 5.0
        %v1561 = vmul.f32 %v1497, 5.0
        %v1562 = vmul.f32 %v1498, 5.0
        %v1563 = vmul.f32 %v1499, 5.0
        %v1564 = vmul.f32 %v1500, 5.0
        %v1565 = vmul.f32 %v1501, 5.0
        %v1566 = vmul.f32 %v1502, 5.0
        %v1567 = vmul.f32 %v1503, 5.0
        %v1568 = vmul.f32 %v1504, 5.0
        %v1569 = vmul.f32 %v1505, 5.0
        %v1570 = vmul.f32 %v1506, 5.0
        %v1571 = vmul.f32 %v1507, 5.0
        %v1572 = vmul.f32 %v1508, 5.0
        %v1573 = vmul.f32 %v1509, 5.0
        %v1574 = vmul.f32 %v1510, 5.0
        %v1575 = vmul.f32 %v1511, 5.0
        %v1576 = vmul.f32 %v1512, 5.0
        %v1577 = vmul.f32 %v1513, 5.0
        %v1578 = vmul.f32 %v1514, 5.0
        %v1579 = vmul.f32 %v1515, 5.0
        %v1580 = vmul.f32 %v1516, 5.0
        %v1581 = vmul.f32 %v1517, 5.0
        %v1582 = vmul.f32 %v1518, 5.0
        %v1583 = vmul.f32 %v1519, 5.0
        %v1584 = vmul.f32 %v1520, 5.0
        %v1585 = vmul.f32 %v1521, 5.0
        %v1586 = vmul.f32 %v1522, 5.0
        %v1587 = vmul.f32 %v1523, 5.0
        %v1588 = vmul.f32 %v1524, 5.0
        %v1589 = vmul.f32 %v1525, 5.0
        %v1590 = vmul.f32 %v1526, 5.0
        %v1591 = vmul.f32 %v1527, 5.0
        %v1592 = vmul.f32 %v1528, 5.0
        %v1593 = vmul.f32 %v1529, 5.0
        %v1594 = vmul.f32 %v1530, 5.0
        %v1595 = vmul.f32 %v1531, 5.0
        %v1596 = vmul.f32 %v1532, 5.0
        %v1597 = vmul.f32 %v1533, 5.0
        %v1598 = vmul.f32 %v1534, 5.0
        %v1599 = vmul.f32 %v1535, 5.0
        %v1600 = vmul.f32 %v1536, 5.0
        %v1601 = vmul.f32 %v1537, 5.0
        %v1602 = vmul.f32 %v1538, 5.0
        %v1603 = vmul.f32 %v1539, 5.0
        %v1604 = vmul.f32 %v1540, 5.0
        %v1605 = vmul.f32 %v1541, 5.0
        %v1606 = vmul.f32 %v1542, 5.0
        %v1607 = vmul.f32 %v1543, 5.0
        %v1608 = vmul.f32 %v1544, 5.0
        %v1609 = vmul.f32 %v1545, 5.0
        %v1610 = vmul.f32 %v1546, 5.0
        %v1611 = vmul.f32 %v1547, 5.0
        %v1612 = vmul.f32 %v1548, 5.0
        %v1613 = vmul.f32 %v1549, 5.0
        %v1614 = vmul.f32 %v1550, 5.0
        %v1615 = vmul.f32 %v1551, 5.0
        %v1616 = vmul.f32 %v1552, 5.0
        %v1617 = vmul.f32 %v1553, 5.0
        %v1618 = vld [vmem:[%s334] sm:$0xff]
        %v1619 = vld [vmem:[%s334 + $0x8] sm:$0xff]
        %v1620 = vld [vmem:[%s334 + $0x10] sm:$0xff]
        %v1621 = vld [vmem:[%s334 + $0x18] sm:$0xff]
        %v1622 = vld [vmem:[%s334 + $0x20] sm:$0xff]
        %v1623 = vld [vmem:[%s334 + $0x28] sm:$0xff]
        %v1624 = vld [vmem:[%s334 + $0x30] sm:$0xff]
        %v1625 = vld [vmem:[%s334 + $0x38] sm:$0xff]
        %v1626 = vld [vmem:[%s334 + $0x40] sm:$0xff]
        %v1627 = vld [vmem:[%s334 + $0x48] sm:$0xff]
        %v1628 = vld [vmem:[%s334 + $0x50] sm:$0xff]
        %v1629 = vld [vmem:[%s334 + $0x58] sm:$0xff]
        %v1630 = vld [vmem:[%s334 + $0x60] sm:$0xff]
        %v1631 = vld [vmem:[%s334 + $0x68] sm:$0xff]
        %v1632 = vld [vmem:[%s334 + $0x70] sm:$0xff]
        %v1633 = vld [vmem:[%s334 + $0x78] sm:$0xff]
        %v1634 = vld [vmem:[%s334 + $0x80] sm:$0xff]
        %v1635 = vld [vmem:[%s334 + $0x88] sm:$0xff]
        %v1636 = vld [vmem:[%s334 + $0x90] sm:$0xff]
        %v1637 = vld [vmem:[%s334 + $0x98] sm:$0xff]
        %v1638 = vld [vmem:[%s334 + $0xa0] sm:$0xff]
        %v1639 = vld [vmem:[%s334 + $0xa8] sm:$0xff]
        %v1640 = vld [vmem:[%s334 + $0xb0] sm:$0xff]
        %v1641 = vld [vmem:[%s334 + $0xb8] sm:$0xff]
        %v1642 = vld [vmem:[%s334 + $0xc0] sm:$0xff]
        %v1643 = vld [vmem:[%s334 + $0xc8] sm:$0xff]
        %v1644 = vld [vmem:[%s334 + $0xd0] sm:$0xff]
        %v1645 = vld [vmem:[%s334 + $0xd8] sm:$0xff]
        %v1646 = vld [vmem:[%s334 + $0xe0] sm:$0xff]
        %v1647 = vld [vmem:[%s334 + $0xe8] sm:$0xff]
        %v1648 = vld [vmem:[%s334 + $0xf0] sm:$0xff]
        %v1649 = vld [vmem:[%s334 + $0xf8] sm:$0xff]
        %v1650 = vld [vmem:[%s334 + $0x100] sm:$0xff]
        %v1651 = vld [vmem:[%s334 + $0x108] sm:$0xff]
        %v1652 = vld [vmem:[%s334 + $0x110] sm:$0xff]
        %v1653 = vld [vmem:[%s334 + $0x118] sm:$0xff]
        %v1654 = vld [vmem:[%s334 + $0x120] sm:$0xff]
        %v1655 = vld [vmem:[%s334 + $0x128] sm:$0xff]
        %v1656 = vld [vmem:[%s334 + $0x130] sm:$0xff]
        %v1657 = vld [vmem:[%s334 + $0x138] sm:$0xff]
        %v1658 = vld [vmem:[%s334 + $0x140] sm:$0xff]
        %v1659 = vld [vmem:[%s334 + $0x148] sm:$0xff]
        %v1660 = vld [vmem:[%s334 + $0x150] sm:$0xff]
        %v1661 = vld [vmem:[%s334 + $0x158] sm:$0xff]
        %v1662 = vld [vmem:[%s334 + $0x160] sm:$0xff]
        %v1663 = vld [vmem:[%s334 + $0x168] sm:$0xff]
        %v1664 = vld [vmem:[%s334 + $0x170] sm:$0xff]
        %v1665 = vld [vmem:[%s334 + $0x178] sm:$0xff]
        %v1666 = vld [vmem:[%s334 + $0x180] sm:$0xff]
        %v1667 = vld [vmem:[%s334 + $0x188] sm:$0xff]
        %v1668 = vld [vmem:[%s334 + $0x190] sm:$0xff]
        %v1669 = vld [vmem:[%s334 + $0x198] sm:$0xff]
        %v1670 = vld [vmem:[%s334 + $0x1a0] sm:$0xff]
        %v1671 = vld [vmem:[%s334 + $0x1a8] sm:$0xff]
        %v1672 = vld [vmem:[%s334 + $0x1b0] sm:$0xff]
        %v1673 = vld [vmem:[%s334 + $0x1b8] sm:$0xff]
        %v1674 = vld [vmem:[%s334 + $0x1c0] sm:$0xff]
        %v1675 = vld [vmem:[%s334 + $0x1c8] sm:$0xff]
        %v1676 = vld [vmem:[%s334 + $0x1d0] sm:$0xff]
        %v1677 = vld [vmem:[%s334 + $0x1d8] sm:$0xff]
        %v1678 = vld [vmem:[%s334 + $0x1e0] sm:$0xff]
        %v1679 = vld [vmem:[%s334 + $0x1e8] sm:$0xff]
        %v1680 = vld [vmem:[%s334 + $0x1f0] sm:$0xff]
        %v1681 = vld [vmem:[%s334 + $0x1f8] sm:$0xff]
        %vm1682 = vcmp.ge.u32.totalorder %v1618, 3435973836
        %vm1683 = vcmp.ge.u32.totalorder %v1619, 3435973836
        %vm1684 = vcmp.ge.u32.totalorder %v1620, 3435973836
        %vm1685 = vcmp.ge.u32.totalorder %v1621, 3435973836
        %vm1686 = vcmp.ge.u32.totalorder %v1622, 3435973836
        %vm1687 = vcmp.ge.u32.totalorder %v1623, 3435973836
        %vm1688 = vcmp.ge.u32.totalorder %v1624, 3435973836
        %vm1689 = vcmp.ge.u32.totalorder %v1625, 3435973836
        %vm1690 = vcmp.ge.u32.totalorder %v1626, 3435973836
        %vm1691 = vcmp.ge.u32.totalorder %v1627, 3435973836
        %vm1692 = vcmp.ge.u32.totalorder %v1628, 3435973836
        %vm1693 = vcmp.ge.u32.totalorder %v1629, 3435973836
        %vm1694 = vcmp.ge.u32.totalorder %v1630, 3435973836
        %vm1695 = vcmp.ge.u32.totalorder %v1631, 3435973836
        %vm1696 = vcmp.ge.u32.totalorder %v1632, 3435973836
        %vm1697 = vcmp.ge.u32.totalorder %v1633, 3435973836
        %vm1698 = vcmp.ge.u32.totalorder %v1634, 3435973836
        %vm1699 = vcmp.ge.u32.totalorder %v1635, 3435973836
        %vm1700 = vcmp.ge.u32.totalorder %v1636, 3435973836
        %vm1701 = vcmp.ge.u32.totalorder %v1637, 3435973836
        %vm1702 = vcmp.ge.u32.totalorder %v1638, 3435973836
        %vm1703 = vcmp.ge.u32.totalorder %v1639, 3435973836
        %vm1704 = vcmp.ge.u32.totalorder %v1640, 3435973836
        %vm1705 = vcmp.ge.u32.totalorder %v1641, 3435973836
        %vm1706 = vcmp.ge.u32.totalorder %v1642, 3435973836
        %vm1707 = vcmp.ge.u32.totalorder %v1643, 3435973836
        %vm1708 = vcmp.ge.u32.totalorder %v1644, 3435973836
        %vm1709 = vcmp.ge.u32.totalorder %v1645, 3435973836
        %vm1710 = vcmp.ge.u32.totalorder %v1646, 3435973836
        %vm1711 = vcmp.ge.u32.totalorder %v1647, 3435973836
        %vm1712 = vcmp.ge.u32.totalorder %v1648, 3435973836
        %vm1713 = vcmp.ge.u32.totalorder %v1649, 3435973836
        %vm1714 = vcmp.ge.u32.totalorder %v1650, 3435973836
        %vm1715 = vcmp.ge.u32.totalorder %v1651, 3435973836
        %vm1716 = vcmp.ge.u32.totalorder %v1652, 3435973836
        %vm1717 = vcmp.ge.u32.totalorder %v1653, 3435973836
        %vm1718 = vcmp.ge.u32.totalorder %v1654, 3435973836
        %vm1719 = vcmp.ge.u32.totalorder %v1655, 3435973836
        %vm1720 = vcmp.ge.u32.totalorder %v1656, 3435973836
        %vm1721 = vcmp.ge.u32.totalorder %v1657, 3435973836
        %vm1722 = vcmp.ge.u32.totalorder %v1658, 3435973836
        %vm1723 = vcmp.ge.u32.totalorder %v1659, 3435973836
        %vm1724 = vcmp.ge.u32.totalorder %v1660, 3435973836
        %vm1725 = vcmp.ge.u32.totalorder %v1661, 3435973836
        %vm1726 = vcmp.ge.u32.totalorder %v1662, 3435973836
        %vm1727 = vcmp.ge.u32.totalorder %v1663, 3435973836
        %vm1728 = vcmp.ge.u32.totalorder %v1664, 3435973836
        %vm1729 = vcmp.ge.u32.totalorder %v1665, 3435973836
        %vm1730 = vcmp.ge.u32.totalorder %v1666, 3435973836
        %vm1731 = vcmp.ge.u32.totalorder %v1667, 3435973836
        %vm1732 = vcmp.ge.u32.totalorder %v1668, 3435973836
        %vm1733 = vcmp.ge.u32.totalorder %v1669, 3435973836
        %vm1734 = vcmp.ge.u32.totalorder %v1670, 3435973836
        %vm1735 = vcmp.ge.u32.totalorder %v1671, 3435973836
        %vm1736 = vcmp.ge.u32.totalorder %v1672, 3435973836
        %vm1737 = vcmp.ge.u32.totalorder %v1673, 3435973836
        %vm1738 = vcmp.ge.u32.totalorder %v1674, 3435973836
        %vm1739 = vcmp.ge.u32.totalorder %v1675, 3435973836
        %vm1740 = vcmp.ge.u32.totalorder %v1676, 3435973836
        %vm1741 = vcmp.ge.u32.totalorder %v1677, 3435973836
        %vm1742 = vcmp.ge.u32.totalorder %v1678, 3435973836
        %vm1743 = vcmp.ge.u32.totalorder %v1679, 3435973836
        %vm1744 = vcmp.ge.u32.totalorder %v1680, 3435973836
        %vm1745 = vcmp.ge.u32.totalorder %v1681, 3435973836
        %v1746 = vmul.f32 %v1235, %v1554
        %v1747 = vmul.f32 %v1237, %v1555
        %v1748 = vmul.f32 %v1239, %v1556
        %v1749 = vmul.f32 %v1241, %v1557
        %v1750 = vmul.f32 %v1243, %v1558
        %v1751 = vmul.f32 %v1245, %v1559
        %v1752 = vmul.f32 %v1247, %v1560
        %v1753 = vmul.f32 %v1249, %v1561
        %v1754 = vmul.f32 %v1251, %v1562
        %v1755 = vmul.f32 %v1253, %v1563
        %v1756 = vmul.f32 %v1255, %v1564
        %v1757 = vmul.f32 %v1257, %v1565
        %v1758 = vmul.f32 %v1259, %v1566
        %v1759 = vmul.f32 %v1261, %v1567
        %v1760 = vmul.f32 %v1263, %v1568
        %v1761 = vmul.f32 %v1265, %v1569
        %v1762 = vmul.f32 %v1267, %v1570
        %v1763 = vmul.f32 %v1269, %v1571
        %v1764 = vmul.f32 %v1271, %v1572
        %v1765 = vmul.f32 %v1273, %v1573
        %v1766 = vmul.f32 %v1275, %v1574
        %v1767 = vmul.f32 %v1277, %v1575
        %v1768 = vmul.f32 %v1279, %v1576
        %v1769 = vmul.f32 %v1281, %v1577
        %v1770 = vmul.f32 %v1283, %v1578
        %v1771 = vmul.f32 %v1285, %v1579
        %v1772 = vmul.f32 %v1287, %v1580
        %v1773 = vmul.f32 %v1289, %v1581
        %v1774 = vmul.f32 %v1291, %v1582
        %v1775 = vmul.f32 %v1293, %v1583
        %v1776 = vmul.f32 %v1295, %v1584
        %v1777 = vmul.f32 %v1297, %v1585
        %v1778 = vmul.f32 %v1299, %v1586
        %v1779 = vmul.f32 %v1301, %v1587
        %v1780 = vmul.f32 %v1303, %v1588
        %v1781 = vmul.f32 %v1305, %v1589
        %v1782 = vmul.f32 %v1307, %v1590
        %v1783 = vmul.f32 %v1309, %v1591
        %v1784 = vmul.f32 %v1311, %v1592
        %v1785 = vmul.f32 %v1313, %v1593
        %v1786 = vmul.f32 %v1315, %v1594
        %v1787 = vmul.f32 %v1317, %v1595
        %v1788 = vmul.f32 %v1319, %v1596
        %v1789 = vmul.f32 %v1321, %v1597
        %v1790 = vmul.f32 %v1323, %v1598
        %v1791 = vmul.f32 %v1325, %v1599
        %v1792 = vmul.f32 %v1327, %v1600
        %v1793 = vmul.f32 %v1329, %v1601
        %v1794 = vmul.f32 %v1331, %v1602
        %v1795 = vmul.f32 %v1333, %v1603
        %v1796 = vmul.f32 %v1335, %v1604
        %v1797 = vmul.f32 %v1337, %v1605
        %v1798 = vmul.f32 %v1339, %v1606
        %v1799 = vmul.f32 %v1341, %v1607
        %v1800 = vmul.f32 %v1343, %v1608
        %v1801 = vmul.f32 %v1345, %v1609
        %v1802 = vmul.f32 %v1347, %v1610
        %v1803 = vmul.f32 %v1349, %v1611
        %v1804 = vmul.f32 %v1351, %v1612
        %v1805 = vmul.f32 %v1353, %v1613
        %v1806 = vmul.f32 %v1355, %v1614
        %v1807 = vmul.f32 %v1357, %v1615
        %v1808 = vmul.f32 %v1359, %v1616
        %v1809 = vmul.f32 %v1361, %v1617
        %v1810 = vsel %vm1682, %v1746, 0.0
        %v1811 = vsel %vm1683, %v1747, 0.0
        %v1812 = vsel %vm1684, %v1748, 0.0
        %v1813 = vsel %vm1685, %v1749, 0.0
        %v1814 = vsel %vm1686, %v1750, 0.0
        %v1815 = vsel %vm1687, %v1751, 0.0
        %v1816 = vsel %vm1688, %v1752, 0.0
        %v1817 = vsel %vm1689, %v1753, 0.0
        %v1818 = vsel %vm1690, %v1754, 0.0
        %v1819 = vsel %vm1691, %v1755, 0.0
        %v1820 = vsel %vm1692, %v1756, 0.0
        %v1821 = vsel %vm1693, %v1757, 0.0
        %v1822 = vsel %vm1694, %v1758, 0.0
        %v1823 = vsel %vm1695, %v1759, 0.0
        %v1824 = vsel %vm1696, %v1760, 0.0
        %v1825 = vsel %vm1697, %v1761, 0.0
        %v1826 = vsel %vm1698, %v1762, 0.0
        %v1827 = vsel %vm1699, %v1763, 0.0
        %v1828 = vsel %vm1700, %v1764, 0.0
        %v1829 = vsel %vm1701, %v1765, 0.0
        %v1830 = vsel %vm1702, %v1766, 0.0
        %v1831 = vsel %vm1703, %v1767, 0.0
        %v1832 = vsel %vm1704, %v1768, 0.0
        %v1833 = vsel %vm1705, %v1769, 0.0
        %v1834 = vsel %vm1706, %v1770, 0.0
        %v1835 = vsel %vm1707, %v1771, 0.0
        %v1836 = vsel %vm1708, %v1772, 0.0
        %v1837 = vsel %vm1709, %v1773, 0.0
        %v1838 = vsel %vm1710, %v1774, 0.0
        %v1839 = vsel %vm1711, %v1775, 0.0
        %v1840 = vsel %vm1712, %v1776, 0.0
        %v1841 = vsel %vm1713, %v1777, 0.0
        %v1842 = vsel %vm1714, %v1778, 0.0
        %v1843 = vsel %vm1715, %v1779, 0.0
        %v1844 = vsel %vm1716, %v1780, 0.0
        %v1845 = vsel %vm1717, %v1781, 0.0
        %v1846 = vsel %vm1718, %v1782, 0.0
        %v1847 = vsel %vm1719, %v1783, 0.0
        %v1848 = vsel %vm1720, %v1784, 0.0
        %v1849 = vsel %vm1721, %v1785, 0.0
        %v1850 = vsel %vm1722, %v1786, 0.0
        %v1851 = vsel %vm1723, %v1787, 0.0
        %v1852 = vsel %vm1724, %v1788, 0.0
        %v1853 = vsel %vm1725, %v1789, 0.0
        %v1854 = vsel %vm1726, %v1790, 0.0
        %v1855 = vsel %vm1727, %v1791, 0.0
        %v1856 = vsel %vm1728, %v1792, 0.0
        %v1857 = vsel %vm1729, %v1793, 0.0
        %v1858 = vsel %vm1730, %v1794, 0.0
        %v1859 = vsel %vm1731, %v1795, 0.0
        %v1860 = vsel %vm1732, %v1796, 0.0
        %v1861 = vsel %vm1733, %v1797, 0.0
        %v1862 = vsel %vm1734, %v1798, 0.0
        %v1863 = vsel %vm1735, %v1799, 0.0
        %v1864 = vsel %vm1736, %v1800, 0.0
        %v1865 = vsel %vm1737, %v1801, 0.0
        %v1866 = vsel %vm1738, %v1802, 0.0
        %v1867 = vsel %vm1739, %v1803, 0.0
        %v1868 = vsel %vm1740, %v1804, 0.0
        %v1869 = vsel %vm1741, %v1805, 0.0
        %v1870 = vsel %vm1742, %v1806, 0.0
        %v1871 = vsel %vm1743, %v1807, 0.0
        %v1872 = vsel %vm1744, %v1808, 0.0
        %v1873 = vsel %vm1745, %v1809, 0.0
        %v1874 = vpack.c.bf16 %v1811, %v1810
        %v1875 = vpack.c.bf16 %v1813, %v1812
        %v1876 = vpack.c.bf16 %v1815, %v1814
        %v1877 = vpack.c.bf16 %v1817, %v1816
        %v1878 = vpack.c.bf16 %v1819, %v1818
        %v1879 = vpack.c.bf16 %v1821, %v1820
        %v1880 = vpack.c.bf16 %v1823, %v1822
        %v1881 = vpack.c.bf16 %v1825, %v1824
        %v1882 = vpack.c.bf16 %v1827, %v1826
        %v1883 = vpack.c.bf16 %v1829, %v1828
        %v1884 = vpack.c.bf16 %v1831, %v1830
        %v1885 = vpack.c.bf16 %v1833, %v1832
        %v1886 = vpack.c.bf16 %v1835, %v1834
        %v1887 = vpack.c.bf16 %v1837, %v1836
        %v1888 = vpack.c.bf16 %v1839, %v1838
        %v1889 = vpack.c.bf16 %v1841, %v1840
        %v1890 = vpack.c.bf16 %v1843, %v1842
        %v1891 = vpack.c.bf16 %v1845, %v1844
        %v1892 = vpack.c.bf16 %v1847, %v1846
        %v1893 = vpack.c.bf16 %v1849, %v1848
        %v1894 = vpack.c.bf16 %v1851, %v1850
        %v1895 = vpack.c.bf16 %v1853, %v1852
        %v1896 = vpack.c.bf16 %v1855, %v1854
        %v1897 = vpack.c.bf16 %v1857, %v1856
        %v1898 = vpack.c.bf16 %v1859, %v1858
        %v1899 = vpack.c.bf16 %v1861, %v1860
        %v1900 = vpack.c.bf16 %v1863, %v1862
        %v1901 = vpack.c.bf16 %v1865, %v1864
        %v1902 = vpack.c.bf16 %v1867, %v1866
        %v1903 = vpack.c.bf16 %v1869, %v1868
        %v1904 = vpack.c.bf16 %v1871, %v1870
        %v1905 = vpack.c.bf16 %v1873, %v1872
        %v1906 = vld [vmem:[%s321] sm:$0xff]
        %v1907 = vld [vmem:[%s321 + $0x8] sm:$0xff]
        %v1908 = vld [vmem:[%s321 + $0x10] sm:$0xff]
        %v1909 = vld [vmem:[%s321 + $0x18] sm:$0xff]
        %v1910 = vld [vmem:[%s321 + $0x20] sm:$0xff]
        %v1911 = vld [vmem:[%s321 + $0x28] sm:$0xff]
        %v1912 = vld [vmem:[%s321 + $0x30] sm:$0xff]
        %v1913 = vld [vmem:[%s321 + $0x38] sm:$0xff]
        %v1914 = vld [vmem:[%s321 + $0x40] sm:$0xff]
        %v1915 = vld [vmem:[%s321 + $0x48] sm:$0xff]
        %v1916 = vld [vmem:[%s321 + $0x50] sm:$0xff]
        %v1917 = vld [vmem:[%s321 + $0x58] sm:$0xff]
        %v1918 = vld [vmem:[%s321 + $0x60] sm:$0xff]
        %v1919 = vld [vmem:[%s321 + $0x68] sm:$0xff]
        %v1920 = vld [vmem:[%s321 + $0x70] sm:$0xff]
        %v1921 = vld [vmem:[%s321 + $0x78] sm:$0xff]
        %v1922 = vld [vmem:[%s321 + $0x80] sm:$0xff]
        %v1923 = vld [vmem:[%s321 + $0x88] sm:$0xff]
        %v1924 = vld [vmem:[%s321 + $0x90] sm:$0xff]
        %v1925 = vld [vmem:[%s321 + $0x98] sm:$0xff]
        %v1926 = vld [vmem:[%s321 + $0xa0] sm:$0xff]
        %v1927 = vld [vmem:[%s321 + $0xa8] sm:$0xff]
        %v1928 = vld [vmem:[%s321 + $0xb0] sm:$0xff]
        %v1929 = vld [vmem:[%s321 + $0xb8] sm:$0xff]
        %v1930 = vld [vmem:[%s321 + $0xc0] sm:$0xff]
        %v1931 = vld [vmem:[%s321 + $0xc8] sm:$0xff]
        %v1932 = vld [vmem:[%s321 + $0xd0] sm:$0xff]
        %v1933 = vld [vmem:[%s321 + $0xd8] sm:$0xff]
        %v1934 = vld [vmem:[%s321 + $0xe0] sm:$0xff]
        %v1935 = vld [vmem:[%s321 + $0xe8] sm:$0xff]
        %v1936 = vld [vmem:[%s321 + $0xf0] sm:$0xff]
        %v1937 = vld [vmem:[%s321 + $0xf8] sm:$0xff]
        %v1938 = vld [vmem:[%s321 + $0x100] sm:$0xff]
        %v1939 = vld [vmem:[%s321 + $0x108] sm:$0xff]
        %v1940 = vld [vmem:[%s321 + $0x110] sm:$0xff]
        %v1941 = vld [vmem:[%s321 + $0x118] sm:$0xff]
        %v1942 = vld [vmem:[%s321 + $0x120] sm:$0xff]
        %v1943 = vld [vmem:[%s321 + $0x128] sm:$0xff]
        %v1944 = vld [vmem:[%s321 + $0x130] sm:$0xff]
        %v1945 = vld [vmem:[%s321 + $0x138] sm:$0xff]
        %v1946 = vld [vmem:[%s321 + $0x140] sm:$0xff]
        %v1947 = vld [vmem:[%s321 + $0x148] sm:$0xff]
        %v1948 = vld [vmem:[%s321 + $0x150] sm:$0xff]
        %v1949 = vld [vmem:[%s321 + $0x158] sm:$0xff]
        %v1950 = vld [vmem:[%s321 + $0x160] sm:$0xff]
        %v1951 = vld [vmem:[%s321 + $0x168] sm:$0xff]
        %v1952 = vld [vmem:[%s321 + $0x170] sm:$0xff]
        %v1953 = vld [vmem:[%s321 + $0x178] sm:$0xff]
        %v1954 = vld [vmem:[%s321 + $0x180] sm:$0xff]
        %v1955 = vld [vmem:[%s321 + $0x188] sm:$0xff]
        %v1956 = vld [vmem:[%s321 + $0x190] sm:$0xff]
        %v1957 = vld [vmem:[%s321 + $0x198] sm:$0xff]
        %v1958 = vld [vmem:[%s321 + $0x1a0] sm:$0xff]
        %v1959 = vld [vmem:[%s321 + $0x1a8] sm:$0xff]
        %v1960 = vld [vmem:[%s321 + $0x1b0] sm:$0xff]
        %v1961 = vld [vmem:[%s321 + $0x1b8] sm:$0xff]
        %v1962 = vld [vmem:[%s321 + $0x1c0] sm:$0xff]
        %v1963 = vld [vmem:[%s321 + $0x1c8] sm:$0xff]
        %v1964 = vld [vmem:[%s321 + $0x1d0] sm:$0xff]
        %v1965 = vld [vmem:[%s321 + $0x1d8] sm:$0xff]
        %v1966 = vld [vmem:[%s321 + $0x1e0] sm:$0xff]
        %v1967 = vld [vmem:[%s321 + $0x1e8] sm:$0xff]
        %v1968 = vld [vmem:[%s321 + $0x1f0] sm:$0xff]
        %v1969 = vld [vmem:[%s321 + $0x1f8] sm:$0xff]
        %v1970 = vpack.c.bf16 %v1907, %v1906
        %v1971 = vpack.c.bf16 %v1909, %v1908
        %v1972 = vpack.c.bf16 %v1911, %v1910
        %v1973 = vpack.c.bf16 %v1913, %v1912
        %v1974 = vpack.c.bf16 %v1915, %v1914
        %v1975 = vpack.c.bf16 %v1917, %v1916
        %v1976 = vpack.c.bf16 %v1919, %v1918
        %v1977 = vpack.c.bf16 %v1921, %v1920
        %v1978 = vpack.c.bf16 %v1923, %v1922
        %v1979 = vpack.c.bf16 %v1925, %v1924
        %v1980 = vpack.c.bf16 %v1927, %v1926
        %v1981 = vpack.c.bf16 %v1929, %v1928
        %v1982 = vpack.c.bf16 %v1931, %v1930
        %v1983 = vpack.c.bf16 %v1933, %v1932
        %v1984 = vpack.c.bf16 %v1935, %v1934
        %v1985 = vpack.c.bf16 %v1937, %v1936
        %v1986 = vpack.c.bf16 %v1939, %v1938
        %v1987 = vpack.c.bf16 %v1941, %v1940
        %v1988 = vpack.c.bf16 %v1943, %v1942
        %v1989 = vpack.c.bf16 %v1945, %v1944
        %v1990 = vpack.c.bf16 %v1947, %v1946
        %v1991 = vpack.c.bf16 %v1949, %v1948
        %v1992 = vpack.c.bf16 %v1951, %v1950
        %v1993 = vpack.c.bf16 %v1953, %v1952
        %v1994 = vpack.c.bf16 %v1955, %v1954
        %v1995 = vpack.c.bf16 %v1957, %v1956
        %v1996 = vpack.c.bf16 %v1959, %v1958
        %v1997 = vpack.c.bf16 %v1961, %v1960
        %v1998 = vpack.c.bf16 %v1963, %v1962
        %v1999 = vpack.c.bf16 %v1965, %v1964
        %v2000 = vpack.c.bf16 %v1967, %v1966
        %v2001 = vpack.c.bf16 %v1969, %v1968
        %2002 = vmatprep.subr.bf16.mxu0 0
        %2003 = vmatpush1.bf16.msra.mxu0 %v1977
        %2004 = vmatprep.subr.bf16.mxu0 0
        %2005 = vmatpush1.bf16.msra.mxu0 %v1976
        %2006 = vmatprep.subr.bf16.mxu0 0
        %2007 = vmatpush1.bf16.msra.mxu0 %v1975
        %2008 = vmatprep.subr.bf16.mxu0 0
        %2009 = vmatpush1.bf16.msra.mxu0 %v1974
        %2010 = vmatprep.subr.bf16.mxu0 0
        %2011 = vmatpush1.bf16.msra.mxu0 %v1973
        %2012 = vmatprep.subr.bf16.mxu0 0
        %2013 = vmatpush1.bf16.msra.mxu0 %v1972
        %2014 = vmatprep.subr.bf16.mxu0 0
        %2015 = vmatpush1.bf16.msra.mxu0 %v1971
        %2016 = vmatprep.subr.bf16.mxu0 0
        %2017 = vmatpush1.bf16.msra.mxu0 %v1970
        %2018 = vmatprep.subr.bf16.mxu0 0
        %2019 = vmatpush2.bf16.msra.mxu0 0
        %2020 = vmatprep.subr.bf16.mxu0 0
        %2021 = vmatpush2.bf16.msra.mxu0 0
        %2022 = vmatprep.subr.bf16.mxu0 0
        %2023 = vmatpush2.bf16.msra.mxu0 0
        %2024 = vmatprep.subr.bf16.mxu0 0
        %2025 = vmatpush2.bf16.msra.mxu0 0
        %2026 = vmatprep.subr.bf16.mxu0 0
        %2027 = vmatpush2.bf16.msra.mxu0 0
        %2028 = vmatprep.subr.bf16.mxu0 0
        %2029 = vmatpush2.bf16.msra.mxu0 0
        %2030 = vmatprep.subr.bf16.mxu0 0
        %2031 = vmatpush2.bf16.msra.mxu0 0
        %2032 = vmatprep.subr.bf16.mxu0 0
        %2033 = vmatpush2.bf16.msra.mxu0 0
        %2034 = vmatprep.mubr.bf16.mxu0 0
        %2035 = vmatmul.mubr.bf16.gmra.mxu0 %v1874
        %v2036 = vpop.f32.mrf.mxu0
        %v2037 = vadd.f32 0.0, %v2036
        %v2038 = vpop.f32.mrf.mxu0
        %v2039 = vpop.f32.mrf.mxu0
        %v2040 = vadd.f32 0.0, %v2039
        %v2041 = vpop.f32.mrf.mxu0
        %2042 = vmatprep.mubr.bf16.mxu0 0
        %2043 = vmatmul.mubr.bf16.gmra.mxu0 %v1875
        %v2044 = vpop.f32.mrf.mxu0
        %v2045 = vadd.f32 0.0, %v2044
        %v2046 = vpop.f32.mrf.mxu0
        %v2047 = vpop.f32.mrf.mxu0
        %v2048 = vadd.f32 0.0, %v2047
        %v2049 = vpop.f32.mrf.mxu0
        %2050 = vmatprep.mubr.bf16.mxu0 0
        %2051 = vmatmul.mubr.bf16.gmra.mxu0 %v1876
        %v2052 = vpop.f32.mrf.mxu0
        %v2053 = vadd.f32 0.0, %v2052
        %v2054 = vpop.f32.mrf.mxu0
        %v2055 = vpop.f32.mrf.mxu0
        %v2056 = vadd.f32 0.0, %v2055
        %v2057 = vpop.f32.mrf.mxu0
        %2058 = vmatprep.mubr.bf16.mxu0 0
        %2059 = vmatmul.mubr.bf16.gmra.mxu0 %v1877
        %v2060 = vpop.f32.mrf.mxu0
        %v2061 = vadd.f32 0.0, %v2060
        %v2062 = vpop.f32.mrf.mxu0
        %v2063 = vpop.f32.mrf.mxu0
        %v2064 = vadd.f32 0.0, %v2063
        %v2065 = vpop.f32.mrf.mxu0
        %2066 = vmatprep.mubr.bf16.mxu0 0
        %2067 = vmatmul.mubr.bf16.gmra.mxu0 %v1878
        %v2068 = vpop.f32.mrf.mxu0
        %v2069 = vadd.f32 0.0, %v2068
        %v2070 = vpop.f32.mrf.mxu0
        %v2071 = vpop.f32.mrf.mxu0
        %v2072 = vadd.f32 0.0, %v2071
        %v2073 = vpop.f32.mrf.mxu0
        %2074 = vmatprep.mubr.bf16.mxu0 0
        %2075 = vmatmul.mubr.bf16.gmra.mxu0 %v1879
        %v2076 = vpop.f32.mrf.mxu0
        %v2077 = vadd.f32 0.0, %v2076
        %v2078 = vpop.f32.mrf.mxu0
        %v2079 = vpop.f32.mrf.mxu0
        %v2080 = vadd.f32 0.0, %v2079
        %v2081 = vpop.f32.mrf.mxu0
        %2082 = vmatprep.mubr.bf16.mxu0 0
        %2083 = vmatmul.mubr.bf16.gmra.mxu0 %v1880
        %v2084 = vpop.f32.mrf.mxu0
        %v2085 = vadd.f32 0.0, %v2084
        %v2086 = vpop.f32.mrf.mxu0
        %v2087 = vpop.f32.mrf.mxu0
        %v2088 = vadd.f32 0.0, %v2087
        %v2089 = vpop.f32.mrf.mxu0
        %2090 = vmatprep.mubr.bf16.mxu0 0
        %2091 = vmatmul.mubr.bf16.gmra.mxu0 %v1881
        %v2092 = vpop.f32.mrf.mxu0
        %v2093 = vadd.f32 0.0, %v2092
        %v2094 = vpop.f32.mrf.mxu0
        %v2095 = vpop.f32.mrf.mxu0
        %v2096 = vadd.f32 0.0, %v2095
        %v2097 = vpop.f32.mrf.mxu0
        %2098 = vdwg.mxu0
        %2099 = vmatprep.subr.bf16.mxu0 0
        %2100 = vmatpush1.bf16.msra.mxu0 %v1985
        %2101 = vmatprep.subr.bf16.mxu0 0
        %2102 = vmatpush1.bf16.msra.mxu0 %v1984
        %2103 = vmatprep.subr.bf16.mxu0 0
        %2104 = vmatpush1.bf16.msra.mxu0 %v1983
        %2105 = vmatprep.subr.bf16.mxu0 0
        %2106 = vmatpush1.bf16.msra.mxu0 %v1982
        %2107 = vmatprep.subr.bf16.mxu0 0
        %2108 = vmatpush1.bf16.msra.mxu0 %v1981
        %2109 = vmatprep.subr.bf16.mxu0 0
        %2110 = vmatpush1.bf16.msra.mxu0 %v1980
        %2111 = vmatprep.subr.bf16.mxu0 0
        %2112 = vmatpush1.bf16.msra.mxu0 %v1979
        %2113 = vmatprep.subr.bf16.mxu0 0
        %2114 = vmatpush1.bf16.msra.mxu0 %v1978
        %2115 = vmatprep.subr.bf16.mxu0 0
        %2116 = vmatpush2.bf16.msra.mxu0 0
        %2117 = vmatprep.subr.bf16.mxu0 0
        %2118 = vmatpush2.bf16.msra.mxu0 0
        %2119 = vmatprep.subr.bf16.mxu0 0
        %2120 = vmatpush2.bf16.msra.mxu0 0
        %2121 = vmatprep.subr.bf16.mxu0 0
        %2122 = vmatpush2.bf16.msra.mxu0 0
        %2123 = vmatprep.subr.bf16.mxu0 0
        %2124 = vmatpush2.bf16.msra.mxu0 0
        %2125 = vmatprep.subr.bf16.mxu0 0
        %2126 = vmatpush2.bf16.msra.mxu0 0
        %2127 = vmatprep.subr.bf16.mxu0 0
        %2128 = vmatpush2.bf16.msra.mxu0 0
        %2129 = vmatprep.subr.bf16.mxu0 0
        %2130 = vmatpush2.bf16.msra.mxu0 0
        %2131 = vmatprep.mubr.bf16.mxu0 0
        %2132 = vmatmul.mubr.bf16.gmra.mxu0 %v1882
        %v2133 = vpop.f32.mrf.mxu0
        %v2134 = vadd.f32 0.0, %v2133
        %v2135 = vpop.f32.mrf.mxu0
        %v2136 = vpop.f32.mrf.mxu0
        %v2137 = vadd.f32 0.0, %v2136
        %v2138 = vpop.f32.mrf.mxu0
        %2139 = vmatprep.mubr.bf16.mxu0 0
        %2140 = vmatmul.mubr.bf16.gmra.mxu0 %v1883
        %v2141 = vpop.f32.mrf.mxu0
        %v2142 = vadd.f32 0.0, %v2141
        %v2143 = vpop.f32.mrf.mxu0
        %v2144 = vpop.f32.mrf.mxu0
        %v2145 = vadd.f32 0.0, %v2144
        %v2146 = vpop.f32.mrf.mxu0
        %2147 = vmatprep.mubr.bf16.mxu0 0
        %2148 = vmatmul.mubr.bf16.gmra.mxu0 %v1884
        %v2149 = vpop.f32.mrf.mxu0
        %v2150 = vadd.f32 0.0, %v2149
        %v2151 = vpop.f32.mrf.mxu0
        %v2152 = vpop.f32.mrf.mxu0
        %v2153 = vadd.f32 0.0, %v2152
        %v2154 = vpop.f32.mrf.mxu0
        %2155 = vmatprep.mubr.bf16.mxu0 0
        %2156 = vmatmul.mubr.bf16.gmra.mxu0 %v1885
        %v2157 = vpop.f32.mrf.mxu0
        %v2158 = vadd.f32 0.0, %v2157
        %v2159 = vpop.f32.mrf.mxu0
        %v2160 = vpop.f32.mrf.mxu0
        %v2161 = vadd.f32 0.0, %v2160
        %v2162 = vpop.f32.mrf.mxu0
        %2163 = vmatprep.mubr.bf16.mxu0 0
        %2164 = vmatmul.mubr.bf16.gmra.mxu0 %v1886
        %v2165 = vpop.f32.mrf.mxu0
        %v2166 = vadd.f32 0.0, %v2165
        %v2167 = vpop.f32.mrf.mxu0
        %v2168 = vpop.f32.mrf.mxu0
        %v2169 = vadd.f32 0.0, %v2168
        %v2170 = vpop.f32.mrf.mxu0
        %2171 = vmatprep.mubr.bf16.mxu0 0
        %2172 = vmatmul.mubr.bf16.gmra.mxu0 %v1887
        %v2173 = vpop.f32.mrf.mxu0
        %v2174 = vadd.f32 0.0, %v2173
        %v2175 = vpop.f32.mrf.mxu0
        %v2176 = vpop.f32.mrf.mxu0
        %v2177 = vadd.f32 0.0, %v2176
        %v2178 = vpop.f32.mrf.mxu0
        %2179 = vmatprep.mubr.bf16.mxu0 0
        %2180 = vmatmul.mubr.bf16.gmra.mxu0 %v1888
        %v2181 = vpop.f32.mrf.mxu0
        %v2182 = vadd.f32 0.0, %v2181
        %v2183 = vpop.f32.mrf.mxu0
        %v2184 = vpop.f32.mrf.mxu0
        %v2185 = vadd.f32 0.0, %v2184
        %v2186 = vpop.f32.mrf.mxu0
        %2187 = vmatprep.mubr.bf16.mxu0 0
        %2188 = vmatmul.mubr.bf16.gmra.mxu0 %v1889
        %v2189 = vpop.f32.mrf.mxu0
        %v2190 = vadd.f32 0.0, %v2189
        %v2191 = vpop.f32.mrf.mxu0
        %v2192 = vpop.f32.mrf.mxu0
        %v2193 = vadd.f32 0.0, %v2192
        %v2194 = vpop.f32.mrf.mxu0
        %2195 = vdwg.mxu0
        %2196 = vmatprep.subr.bf16.mxu0 0
        %2197 = vmatpush1.bf16.msra.mxu0 %v1993
        %2198 = vmatprep.subr.bf16.mxu0 0
        %2199 = vmatpush1.bf16.msra.mxu0 %v1992
        %2200 = vmatprep.subr.bf16.mxu0 0
        %2201 = vmatpush1.bf16.msra.mxu0 %v1991
        %2202 = vmatprep.subr.bf16.mxu0 0
        %2203 = vmatpush1.bf16.msra.mxu0 %v1990
        %2204 = vmatprep.subr.bf16.mxu0 0
        %2205 = vmatpush1.bf16.msra.mxu0 %v1989
        %2206 = vmatprep.subr.bf16.mxu0 0
        %2207 = vmatpush1.bf16.msra.mxu0 %v1988
        %2208 = vmatprep.subr.bf16.mxu0 0
        %2209 = vmatpush1.bf16.msra.mxu0 %v1987
        %2210 = vmatprep.subr.bf16.mxu0 0
        %2211 = vmatpush1.bf16.msra.mxu0 %v1986
        %2212 = vmatprep.subr.bf16.mxu0 0
        %2213 = vmatpush2.bf16.msra.mxu0 0
        %2214 = vmatprep.subr.bf16.mxu0 0
        %2215 = vmatpush2.bf16.msra.mxu0 0
        %2216 = vmatprep.subr.bf16.mxu0 0
        %2217 = vmatpush2.bf16.msra.mxu0 0
        %2218 = vmatprep.subr.bf16.mxu0 0
        %2219 = vmatpush2.bf16.msra.mxu0 0
        %2220 = vmatprep.subr.bf16.mxu0 0
        %2221 = vmatpush2.bf16.msra.mxu0 0
        %2222 = vmatprep.subr.bf16.mxu0 0
        %2223 = vmatpush2.bf16.msra.mxu0 0
        %2224 = vmatprep.subr.bf16.mxu0 0
        %2225 = vmatpush2.bf16.msra.mxu0 0
        %2226 = vmatprep.subr.bf16.mxu0 0
        %2227 = vmatpush2.bf16.msra.mxu0 0
        %2228 = vmatprep.mubr.bf16.mxu0 0
        %2229 = vmatmul.mubr.bf16.gmra.mxu0 %v1890
        %v2230 = vpop.f32.mrf.mxu0
        %v2231 = vadd.f32 0.0, %v2230
        %v2232 = vpop.f32.mrf.mxu0
        %v2233 = vpop.f32.mrf.mxu0
        %v2234 = vadd.f32 0.0, %v2233
        %v2235 = vpop.f32.mrf.mxu0
        %2236 = vmatprep.mubr.bf16.mxu0 0
        %2237 = vmatmul.mubr.bf16.gmra.mxu0 %v1891
        %v2238 = vpop.f32.mrf.mxu0
        %v2239 = vadd.f32 0.0, %v2238
        %v2240 = vpop.f32.mrf.mxu0
        %v2241 = vpop.f32.mrf.mxu0
        %v2242 = vadd.f32 0.0, %v2241
        %v2243 = vpop.f32.mrf.mxu0
        %2244 = vmatprep.mubr.bf16.mxu0 0
        %2245 = vmatmul.mubr.bf16.gmra.mxu0 %v1892
        %v2246 = vpop.f32.mrf.mxu0
        %v2247 = vadd.f32 0.0, %v2246
        %v2248 = vpop.f32.mrf.mxu0
        %v2249 = vpop.f32.mrf.mxu0
        %v2250 = vadd.f32 0.0, %v2249
        %v2251 = vpop.f32.mrf.mxu0
        %2252 = vmatprep.mubr.bf16.mxu0 0
        %2253 = vmatmul.mubr.bf16.gmra.mxu0 %v1893
        %v2254 = vpop.f32.mrf.mxu0
        %v2255 = vadd.f32 0.0, %v2254
        %v2256 = vpop.f32.mrf.mxu0
        %v2257 = vpop.f32.mrf.mxu0
        %v2258 = vadd.f32 0.0, %v2257
        %v2259 = vpop.f32.mrf.mxu0
        %2260 = vmatprep.mubr.bf16.mxu0 0
        %2261 = vmatmul.mubr.bf16.gmra.mxu0 %v1894
        %v2262 = vpop.f32.mrf.mxu0
        %v2263 = vadd.f32 0.0, %v2262
        %v2264 = vpop.f32.mrf.mxu0
        %v2265 = vpop.f32.mrf.mxu0
        %v2266 = vadd.f32 0.0, %v2265
        %v2267 = vpop.f32.mrf.mxu0
        %2268 = vmatprep.mubr.bf16.mxu0 0
        %2269 = vmatmul.mubr.bf16.gmra.mxu0 %v1895
        %v2270 = vpop.f32.mrf.mxu0
        %v2271 = vadd.f32 0.0, %v2270
        %v2272 = vpop.f32.mrf.mxu0
        %v2273 = vpop.f32.mrf.mxu0
        %v2274 = vadd.f32 0.0, %v2273
        %v2275 = vpop.f32.mrf.mxu0
        %2276 = vmatprep.mubr.bf16.mxu0 0
        %2277 = vmatmul.mubr.bf16.gmra.mxu0 %v1896
        %v2278 = vpop.f32.mrf.mxu0
        %v2279 = vadd.f32 0.0, %v2278
        %v2280 = vpop.f32.mrf.mxu0
        %v2281 = vpop.f32.mrf.mxu0
        %v2282 = vadd.f32 0.0, %v2281
        %v2283 = vpop.f32.mrf.mxu0
        %2284 = vmatprep.mubr.bf16.mxu0 0
        %2285 = vmatmul.mubr.bf16.gmra.mxu0 %v1897
        %v2286 = vpop.f32.mrf.mxu0
        %v2287 = vadd.f32 0.0, %v2286
        %v2288 = vpop.f32.mrf.mxu0
        %v2289 = vpop.f32.mrf.mxu0
        %v2290 = vadd.f32 0.0, %v2289
        %v2291 = vpop.f32.mrf.mxu0
        %2292 = vdwg.mxu0
        %2293 = vmatprep.subr.bf16.mxu0 0
        %2294 = vmatpush1.bf16.msra.mxu0 %v2001
        %2295 = vmatprep.subr.bf16.mxu0 0
        %2296 = vmatpush1.bf16.msra.mxu0 %v2000
        %2297 = vmatprep.subr.bf16.mxu0 0
        %2298 = vmatpush1.bf16.msra.mxu0 %v1999
        %2299 = vmatprep.subr.bf16.mxu0 0
        %2300 = vmatpush1.bf16.msra.mxu0 %v1998
        %2301 = vmatprep.subr.bf16.mxu0 0
        %2302 = vmatpush1.bf16.msra.mxu0 %v1997
        %2303 = vmatprep.subr.bf16.mxu0 0
        %2304 = vmatpush1.bf16.msra.mxu0 %v1996
        %2305 = vmatprep.subr.bf16.mxu0 0
        %2306 = vmatpush1.bf16.msra.mxu0 %v1995
        %2307 = vmatprep.subr.bf16.mxu0 0
        %2308 = vmatpush1.bf16.msra.mxu0 %v1994
        %2309 = vmatprep.subr.bf16.mxu0 0
        %2310 = vmatpush2.bf16.msra.mxu0 0
        %2311 = vmatprep.subr.bf16.mxu0 0
        %2312 = vmatpush2.bf16.msra.mxu0 0
        %2313 = vmatprep.subr.bf16.mxu0 0
        %2314 = vmatpush2.bf16.msra.mxu0 0
        %2315 = vmatprep.subr.bf16.mxu0 0
        %2316 = vmatpush2.bf16.msra.mxu0 0
        %2317 = vmatprep.subr.bf16.mxu0 0
        %2318 = vmatpush2.bf16.msra.mxu0 0
        %2319 = vmatprep.subr.bf16.mxu0 0
        %2320 = vmatpush2.bf16.msra.mxu0 0
        %2321 = vmatprep.subr.bf16.mxu0 0
        %2322 = vmatpush2.bf16.msra.mxu0 0
        %2323 = vmatprep.subr.bf16.mxu0 0
        %2324 = vmatpush2.bf16.msra.mxu0 0
        %2325 = vmatprep.mubr.bf16.mxu0 0
        %2326 = vmatmul.mubr.bf16.gmra.mxu0 %v1898
        %v2327 = vpop.f32.mrf.mxu0
        %v2328 = vadd.f32 0.0, %v2327
        %v2329 = vpop.f32.mrf.mxu0
        %v2330 = vpop.f32.mrf.mxu0
        %v2331 = vadd.f32 0.0, %v2330
        %v2332 = vpop.f32.mrf.mxu0
        %2333 = vmatprep.mubr.bf16.mxu0 0
        %2334 = vmatmul.mubr.bf16.gmra.mxu0 %v1899
        %v2335 = vpop.f32.mrf.mxu0
        %v2336 = vadd.f32 0.0, %v2335
        %v2337 = vpop.f32.mrf.mxu0
        %v2338 = vpop.f32.mrf.mxu0
        %v2339 = vadd.f32 0.0, %v2338
        %v2340 = vpop.f32.mrf.mxu0
        %2341 = vmatprep.mubr.bf16.mxu0 0
        %2342 = vmatmul.mubr.bf16.gmra.mxu0 %v1900
        %v2343 = vpop.f32.mrf.mxu0
        %v2344 = vadd.f32 0.0, %v2343
        %v2345 = vpop.f32.mrf.mxu0
        %v2346 = vpop.f32.mrf.mxu0
        %v2347 = vadd.f32 0.0, %v2346
        %v2348 = vpop.f32.mrf.mxu0
        %2349 = vmatprep.mubr.bf16.mxu0 0
        %2350 = vmatmul.mubr.bf16.gmra.mxu0 %v1901
        %v2351 = vpop.f32.mrf.mxu0
        %v2352 = vadd.f32 0.0, %v2351
        %v2353 = vpop.f32.mrf.mxu0
        %v2354 = vpop.f32.mrf.mxu0
        %v2355 = vadd.f32 0.0, %v2354
        %v2356 = vpop.f32.mrf.mxu0
        %2357 = vmatprep.mubr.bf16.mxu0 0
        %2358 = vmatmul.mubr.bf16.gmra.mxu0 %v1902
        %v2359 = vpop.f32.mrf.mxu0
        %v2360 = vadd.f32 0.0, %v2359
        %v2361 = vpop.f32.mrf.mxu0
        %v2362 = vpop.f32.mrf.mxu0
        %v2363 = vadd.f32 0.0, %v2362
        %v2364 = vpop.f32.mrf.mxu0
        %2365 = vmatprep.mubr.bf16.mxu0 0
        %2366 = vmatmul.mubr.bf16.gmra.mxu0 %v1903
        %v2367 = vpop.f32.mrf.mxu0
        %v2368 = vadd.f32 0.0, %v2367
        %v2369 = vpop.f32.mrf.mxu0
        %v2370 = vpop.f32.mrf.mxu0
        %v2371 = vadd.f32 0.0, %v2370
        %v2372 = vpop.f32.mrf.mxu0
        %2373 = vmatprep.mubr.bf16.mxu0 0
        %2374 = vmatmul.mubr.bf16.gmra.mxu0 %v1904
        %v2375 = vpop.f32.mrf.mxu0
        %v2376 = vadd.f32 0.0, %v2375
        %v2377 = vpop.f32.mrf.mxu0
        %v2378 = vpop.f32.mrf.mxu0
        %v2379 = vadd.f32 0.0, %v2378
        %v2380 = vpop.f32.mrf.mxu0
        %2381 = vmatprep.mubr.bf16.mxu0 0
        %2382 = vmatmul.mubr.bf16.gmra.mxu0 %v1905
        %v2383 = vpop.f32.mrf.mxu0
        %v2384 = vadd.f32 0.0, %v2383
        %v2385 = vpop.f32.mrf.mxu0
        %v2386 = vpop.f32.mrf.mxu0
        %v2387 = vadd.f32 0.0, %v2386
        %v2388 = vpop.f32.mrf.mxu0
        %2389 = vdwg.mxu0
        %2390 = vst [vmem:[%s375] sm:$0xff] %v2037
        %2391 = vst [vmem:[%s375 + $0x8] sm:$0xff] %v2040
        %2392 = vst [vmem:[%s375 + $0x10] sm:$0xff] %v2045
        %2393 = vst [vmem:[%s375 + $0x18] sm:$0xff] %v2048
        %2394 = vst [vmem:[%s375 + $0x20] sm:$0xff] %v2053
        %2395 = vst [vmem:[%s375 + $0x28] sm:$0xff] %v2056
        %2396 = vst [vmem:[%s375 + $0x30] sm:$0xff] %v2061
        %2397 = vst [vmem:[%s375 + $0x38] sm:$0xff] %v2064
        %2398 = vst [vmem:[%s375 + $0x40] sm:$0xff] %v2069
        %2399 = vst [vmem:[%s375 + $0x48] sm:$0xff] %v2072
        %2400 = vst [vmem:[%s375 + $0x50] sm:$0xff] %v2077
        %2401 = vst [vmem:[%s375 + $0x58] sm:$0xff] %v2080
        %2402 = vst [vmem:[%s375 + $0x60] sm:$0xff] %v2085
        %2403 = vst [vmem:[%s375 + $0x68] sm:$0xff] %v2088
        %2404 = vst [vmem:[%s375 + $0x70] sm:$0xff] %v2093
        %2405 = vst [vmem:[%s375 + $0x78] sm:$0xff] %v2096
        %2406 = vst [vmem:[%s375 + $0x80] sm:$0xff] %v2134
        %2407 = vst [vmem:[%s375 + $0x88] sm:$0xff] %v2137
        %2408 = vst [vmem:[%s375 + $0x90] sm:$0xff] %v2142
        %2409 = vst [vmem:[%s375 + $0x98] sm:$0xff] %v2145
        %2410 = vst [vmem:[%s375 + $0xa0] sm:$0xff] %v2150
        %2411 = vst [vmem:[%s375 + $0xa8] sm:$0xff] %v2153
        %2412 = vst [vmem:[%s375 + $0xb0] sm:$0xff] %v2158
        %2413 = vst [vmem:[%s375 + $0xb8] sm:$0xff] %v2161
        %2414 = vst [vmem:[%s375 + $0xc0] sm:$0xff] %v2166
        %2415 = vst [vmem:[%s375 + $0xc8] sm:$0xff] %v2169
        %2416 = vst [vmem:[%s375 + $0xd0] sm:$0xff] %v2174
        %2417 = vst [vmem:[%s375 + $0xd8] sm:$0xff] %v2177
        %2418 = vst [vmem:[%s375 + $0xe0] sm:$0xff] %v2182
        %2419 = vst [vmem:[%s375 + $0xe8] sm:$0xff] %v2185
        %2420 = vst [vmem:[%s375 + $0xf0] sm:$0xff] %v2190
        %2421 = vst [vmem:[%s375 + $0xf8] sm:$0xff] %v2193
        %2422 = vst [vmem:[%s375 + $0x100] sm:$0xff] %v2231
        %2423 = vst [vmem:[%s375 + $0x108] sm:$0xff] %v2234
        %2424 = vst [vmem:[%s375 + $0x110] sm:$0xff] %v2239
        %2425 = vst [vmem:[%s375 + $0x118] sm:$0xff] %v2242
        %2426 = vst [vmem:[%s375 + $0x120] sm:$0xff] %v2247
        %2427 = vst [vmem:[%s375 + $0x128] sm:$0xff] %v2250
        %2428 = vst [vmem:[%s375 + $0x130] sm:$0xff] %v2255
        %2429 = vst [vmem:[%s375 + $0x138] sm:$0xff] %v2258
        %2430 = vst [vmem:[%s375 + $0x140] sm:$0xff] %v2263
        %2431 = vst [vmem:[%s375 + $0x148] sm:$0xff] %v2266
        %2432 = vst [vmem:[%s375 + $0x150] sm:$0xff] %v2271
        %2433 = vst [vmem:[%s375 + $0x158] sm:$0xff] %v2274
        %2434 = vst [vmem:[%s375 + $0x160] sm:$0xff] %v2279
        %2435 = vst [vmem:[%s375 + $0x168] sm:$0xff] %v2282
        %2436 = vst [vmem:[%s375 + $0x170] sm:$0xff] %v2287
        %2437 = vst [vmem:[%s375 + $0x178] sm:$0xff] %v2290
        %2438 = vst [vmem:[%s375 + $0x180] sm:$0xff] %v2328
        %2439 = vst [vmem:[%s375 + $0x188] sm:$0xff] %v2331
        %2440 = vst [vmem:[%s375 + $0x190] sm:$0xff] %v2336
        %2441 = vst [vmem:[%s375 + $0x198] sm:$0xff] %v2339
        %2442 = vst [vmem:[%s375 + $0x1a0] sm:$0xff] %v2344
        %2443 = vst [vmem:[%s375 + $0x1a8] sm:$0xff] %v2347
        %2444 = vst [vmem:[%s375 + $0x1b0] sm:$0xff] %v2352
        %2445 = vst [vmem:[%s375 + $0x1b8] sm:$0xff] %v2355
        %2446 = vst [vmem:[%s375 + $0x1c0] sm:$0xff] %v2360
        %2447 = vst [vmem:[%s375 + $0x1c8] sm:$0xff] %v2363
        %2448 = vst [vmem:[%s375 + $0x1d0] sm:$0xff] %v2368
        %2449 = vst [vmem:[%s375 + $0x1d8] sm:$0xff] %v2371
        %2450 = vst [vmem:[%s375 + $0x1e0] sm:$0xff] %v2376
        %2451 = vst [vmem:[%s375 + $0x1e8] sm:$0xff] %v2379
        %2452 = vst [vmem:[%s375 + $0x1f0] sm:$0xff] %v2384
        %2453 = vst [vmem:[%s375 + $0x1f8] sm:$0xff] %v2387
        %s2454 = sand.u32 %s159, 1
        %s2455 = scalar_lea.sflag [#allocation4], %s2454
        %s2456 = sand.u32 %s159, 1
        %s2457 = smul.addr %s2456, 512
        %s2458 = scalar_lea.vmem [#allocation11], %s2457
        // Predicated region
        $region61: #{tpu_custom_call.1} parent=39 // pred_check
          %p2459 = pneg %p169
        $region62: #{tpu_custom_call.1} parent=39 // pred_check_branch
          %2461 = sbr.rel (%p2459) target = $region64
        $region63: #{tpu_custom_call.1} parent=39 // pred_region
          %s2462 = smul.u32 4, %s26
          %s2464 = ssub.s32 8192, 8192
          %2465 = vsyncadd %s2455, %s2464
          %s2466 = smul.addr %s2462, 16
          %s2467 = smul.addr %s2466, 128
          %s2468 = scalar_lea.hbm %s5, %s2467
          %s2469 = sshll.u32 %s2458, 4
          %s2470 = int_to_ptr.vmem [resolvable:$true] %s2469
          %2475 = dma.vmem_to_hbm [thread:$0]  %s2470, 8192, %s2468, %s2455, 128, 128, 8
        $region64: #{tpu_custom_call.1} parent=39 // pred_fallthru
          _
      $region40: #{tpu_custom_call.1} parent=5 // pred_fallthru
        _
      %p2476 = scmp.le.s32.totalorder 2, %s21
      // Predicated region
      $region65: #{tpu_custom_call.1} parent=5 // pred_check
        %p2477 = pneg %p2476
      $region66: #{tpu_custom_call.1} parent=5 // pred_check_branch
        %2479 = sbr.rel (%p2477) target = $region68
      $region67: #{tpu_custom_call.1} parent=5 // pred_region
        %s2480 = ssub.s32 %s21, 2
        // Predicated region
        $region69: #{tpu_custom_call.1} parent=67 // pred_check
          %p2481 = pneg %p175
        $region70: #{tpu_custom_call.1} parent=67 // pred_check_branch
          %2483 = sbr.rel (%p2481) target = $region72
        $region71: #{tpu_custom_call.1} parent=67 // pred_region
          %s2484 = sand.u32 %s160, 1
          %s2485 = scalar_lea.sflag [#allocation4], %s2484
          %s2486 = sand.u32 %s160, 1
          %s2487 = smul.addr %s2486, 512
          %s2488 = scalar_lea.vmem [#allocation11], %s2487
          %2489 = dma.done %s2485, 8192
        $region72: #{tpu_custom_call.1} parent=67 // pred_fallthru
          _
      $region68: #{tpu_custom_call.1} parent=5 // pred_fallthru
        _
    $region6: #{tpu_custom_call.1} parent=1 // loop_footer
      %s25 = sadd.s32 1, %s21
    $region7: #{tpu_custom_call.1} parent=1 // loop_footer_branch
      %20 = sbr.rel target = $region3
    $region8: #{tpu_custom_call.1} parent=1 // loop_exit
      _
    %2490 = vsyncpa [#allocation3], 1
    %s2491 = scalar_lea.sflag [#allocation3], 1
    %2492 = vsyncpa %s2491, 1
    %2493 = vsyncpa [#allocation6], 1
    %s2494 = scalar_lea.sflag [#allocation6], 1
    %2495 = vsyncpa %s2494, 1
    %2496 = vsyncpa [#allocation9], 1
    %2497 = vsyncpa [#allocation4], 1
    %s2498 = scalar_lea.sflag [#allocation4], 1
    %2499 = vsyncpa %s2498, 1

</llo_original>
